<compile_context>
chip_gen: v6e
topology: v6e:2x2x1
jax: 0.10.0
libtpu: 0.0.40
codegen_flags: <defaults>
</compile_context>

<pallas_src>
import jax
import jax.numpy as jnp
from jax.experimental import pallas as pl
from jax.experimental.pallas import tpu as pltpu

# Full-f32 matmuls everywhere (host folding, reference, and the kernel trace).
jax.config.update("jax_default_matmul_precision", "highest")

# ---------------- problem sizes (small, consistent with the module) ----------------
B = 4             # graphs batched into one pallas_call (leading grid axis)
N = 8             # nodes per graph
F_IN = 16         # num_in_features
NH = 4            # num_of_heads
F_OUT = 8         # num_out_features
HD = NH * F_OUT   # concat output width (!= F_IN -> skip_proj path is used)
E = 3 * N         # edges per graph (ring neighbours + self loops in the example)


# ---------------------------------- Pallas kernel ----------------------------------
def gat_kernel(x2_ref, w2_ref, bias_ref, st_ref, tt_ref, out_ref, ew_ref):
    """One graph per grid step.  3 MXU dots total:
         (1) X2 @ W2            : projection + both per-head scores + skip, in one shot
         (2) ST @ lift_rhs      : gather (lift) node rows -> edge rows
         (3) Tt @ [exp|exp*proj]: fused scatter-add of softmax denominator + aggregate
    """
    n, hd = out_ref.shape                               # (N, HD)

    # (1) single fused projection dot.
    #     rows 0..N-1 : [scores_src_full | proj | skip]
    #     rows N..2N-1: [scores_trg_full |  0   |  0  ]
    ps2 = jnp.dot(x2_ref[...], w2_ref[...], preferred_element_type=jnp.float32)
    lift_rhs = ps2[:, :2 * hd]                          # (2N, 2*HD)
    skip_out = ps2[:n, 2 * hd:]                         # (N, HD) = x @ wskip

    # (2) lift (index_select nodes -> edges) with host-built incidence ST = [S | T]
    #     (S[e, src[e]] = 1, T[e, trg[e]] = 1).
    lifted = jnp.dot(st_ref[...], lift_rhs, preferred_element_type=jnp.float32)
    e_full = lifted[:, :hd]        # per-edge score, replicated across each head block
    proj_lift = lifted[:, hd:]     # projected source-node features gathered to edges

    # LeakyReLU(0.2).  The reference's global max-shift cancels exactly in the
    # normalized output, so it is dropped; the clamp only guards f32 exp overflow.
    es = jnp.where(e_full > 0.0, e_full, 0.2 * e_full)
    exp_e = jnp.exp(jnp.minimum(es, 60.0))              # (E, HD)

    # (3) fused scatter-add over target nodes: [softmax denominator | unnormalized agg].
    #     LHS assembled with static-offset slice writes (no jnp.concatenate).
    ew_ref[:, :hd] = exp_e
    ew_ref[:, hd:] = exp_e * proj_lift
    agg = jnp.dot(tt_ref[...], ew_ref[...], preferred_element_type=jnp.float32)  # (N, 2*HD)
    denom = agg[:, :hd]
    unnorm = agg[:, hd:]

    # neighborhood-aware softmax normalization after aggregation (denominator constant
    # per neighborhood), exact division; then skip + bias + ELU(alpha=1).
    out = unnorm / (denom + 1e-16)
    out = out + skip_out + bias_ref[...]
    out_ref[...] = jnp.where(out > 0.0, out, jnp.exp(jnp.minimum(out, 0.0)) - 1.0)


def gat_forward_pallas(x, edge_index, wp, wskip, s_src, s_trg, bias):
    """x: (B, N, F_IN) node features of B identically-structured graphs.
       edge_index: (2, E) int32 shared across the batch.  Returns (B, N, HD)."""
    b, n, f_in = x.shape
    e = edge_index.shape[1]
    src = edge_index[0].astype(jnp.int32)
    trg = edge_index[1].astype(jnp.int32)

    # ---- host-side parameter folding (done once, like any weight fusion) ----
    #   scores_src = ((x@wp) * s_flat) @ Bdiag  ==  x @ (wp @ (diag(s_flat) @ Bdiag)),
    # Bdiag = block-diag of ones(F_OUT,F_OUT): sums within a head and replicates the
    # per-head score across that head's F_OUT lanes.
    blk = jnp.kron(jnp.eye(NH, dtype=jnp.float32),
                   jnp.ones((F_OUT, F_OUT), jnp.float32))             # (HD, HD)
    w_src = wp @ (s_src.reshape(HD, 1) * blk)                         # (F_IN, HD)
    w_trg = wp @ (s_trg.reshape(HD, 1) * blk)                         # (F_IN, HD)
    # W2 = [[w_src | wp | wskip], [w_trg | 0 | 0]]   (2*F_IN, 3*HD)
    w2 = jnp.concatenate(
        [jnp.concatenate([w_src, wp, wskip], axis=1),
         jnp.concatenate([w_trg, jnp.zeros((f_in, 2 * HD), jnp.float32)], axis=1)],
        axis=0)

    # X2 = [[x, 0], [0, x]] per graph -> dot 1 needs no in-kernel shuffle.
    x2 = jnp.zeros((b, 2 * n, 2 * f_in), jnp.float32)
    x2 = x2.at[:, :n, :f_in].set(x)
    x2 = x2.at[:, n:, f_in:].set(x)

    # Dense incidence matrices, precomputed on the host (tiny; hidden by the pipeline).
    er = jnp.arange(e)
    st = jnp.zeros((e, 2 * n), jnp.float32).at[er, src].set(1.0)      # S block
    st = st.at[er, n + trg].set(1.0)                                  # T block
    tt = jnp.zeros((n, e), jnp.float32).at[trg, er].set(1.0)          # T^T

    bias2d = bias.reshape(1, HD)

    flops = b * (2 * (2 * n) * (2 * f_in) * (3 * HD)
                 + 2 * e * (2 * n) * (2 * HD)
                 + 2 * n * e * (2 * HD))
    bytes_accessed = 4 * (x2.size + w2.size + bias2d.size + st.size + tt.size
                          + b * n * HD)

    return pl.pallas_call(
        gat_kernel,
        out_shape=jax.ShapeDtypeStruct((b, n, HD), jnp.float32),
        grid=(b,),
        in_specs=[
            pl.BlockSpec((None, 2 * n, 2 * f_in), lambda i: (i, 0, 0)),  # per-graph
            pl.BlockSpec((2 * f_in, 3 * HD), lambda i: (0, 0)),          # resident
            pl.BlockSpec((1, HD), lambda i: (0, 0)),                     # resident
            pl.BlockSpec((e, 2 * n), lambda i: (0, 0)),                  # resident
            pl.BlockSpec((n, e), lambda i: (0, 0)),                      # resident
        ],
        out_specs=pl.BlockSpec((None, n, HD), lambda i: (i, 0, 0)),
        scratch_shapes=[pltpu.VMEM((e, 2 * HD), jnp.float32)],
        compiler_params=pltpu.CompilerParams(
            dimension_semantics=("parallel",)),   # v7x: batch split across both TCs
        cost_estimate=pl.CostEstimate(
            flops=flops,
            transcendentals=b * (e * HD + n * HD),
            bytes_accessed=bytes_accessed),
    )(x2, w2, bias2d, st, tt)


# -------------------------- plain-JAX reference (for checking) ---------------------
def gat_forward_reference(x, edge_index, wp, wskip, s_src, s_trg, bias):
    """Direct transcription of GATLayerImp3.forward (eval mode), single graph."""
    src, trg = edge_index[0], edge_index[1]
    n = x.shape[0]
    proj = (x @ wp).reshape(n, NH, F_OUT)
    scores_src = (proj * s_src[None]).sum(-1)               # (N, NH)
    scores_trg = (proj * s_trg[None]).sum(-1)                # (N, NH)
    e = scores_src[src] + scores_trg[trg]                    # (E, NH)
    e = jnp.where(e > 0, e, 0.2 * e)
    e = e - e.max()
    exp_e = jnp.exp(e)
    denom = jnp.zeros((n, NH), jnp.float32).at[trg].add(exp_e)
    attn = exp_e / (denom[trg] + 1e-16)
    weighted = proj[src] * attn[:, :, None]
    out = jnp.zeros((n, NH, F_OUT), jnp.float32).at[trg].add(weighted)
    out = out + (x @ wskip).reshape(n, NH, F_OUT)
    out = out.reshape(n, HD) + bias
    return jnp.where(out > 0, out, jnp.exp(out) - 1.0)


# ----------------------------------------- main -------------------------------------
if __name__ == "__main__":
    key = jax.random.PRNGKey(0)
    kx, kp, ks, k1, k2 = jax.random.split(key, 5)

    # deterministic node features for a batch of identically-structured graphs
    x = jax.random.normal(kx, (B, N, F_IN), dtype=jnp.float32)

    # deterministic edge list: ring neighbours + self loops -> E = 3N = 24
    idx = jnp.arange(N)
    src = jnp.concatenate([(idx - 1) % N, (idx + 1) % N, idx])
    trg = jnp.concatenate([idx, idx, idx])
    edge_index = jnp.stack([src, trg]).astype(jnp.int32)     # (2, E)

    # deterministic parameter init (Glorot-style uniform; bias zeros as in init_params)
    def glorot(k, shape, fan_in, fan_out):
        bound = (6.0 / (fan_in + fan_out)) ** 0.5
        return jax.random.uniform(k, shape, jnp.float32, -bound, bound)

    wp = glorot(kp, (F_IN, HD), F_IN, HD)                    # linear_proj.weight^T
    wskip = glorot(ks, (F_IN, HD), F_IN, HD)                 # skip_proj.weight^T
    s_src = glorot(k1, (NH, F_OUT), NH, F_OUT)               # scoring_fn_source
    s_trg = glorot(k2, (NH, F_OUT), NH, F_OUT)               # scoring_fn_target
    bias = jnp.zeros((HD,), jnp.float32)

    out = gat_forward_pallas(x, edge_index, wp, wskip, s_src, s_trg, bias)
    out = jax.block_until_ready(out)

    ref = jax.vmap(lambda xb: gat_forward_reference(
        xb, edge_index, wp, wskip, s_src, s_trg, bias))(x)

    assert out.shape == (B, N, HD)
    # with "highest" matmul precision everywhere the remaining error is only the
    # host-side weight-folding reassociation / scatter-vs-matmul summation order
    assert jnp.allclose(out, ref, atol=1e-3, rtol=1e-3), "mismatch vs reference"

    print("KERNEL_OK")
</pallas_src>

<mosaic_0001>
module attributes {stable_mosaic.version = 11 : i64} {
  func.func @gat_kernel(%arg0: i32, %arg1: memref<1x16x32xf32, #tpu.memory_space<vmem>>, %arg2: memref<32x96xf32, #tpu.memory_space<vmem>>, %arg3: memref<1x32xf32, #tpu.memory_space<vmem>>, %arg4: memref<24x16xf32, #tpu.memory_space<vmem>>, %arg5: memref<8x24xf32, #tpu.memory_space<vmem>>, %arg6: memref<1x8x32xf32, #tpu.memory_space<vmem>>, %arg7: memref<24x64xf32, #tpu.memory_space<vmem>>) attributes {dimension_semantics = [#tpu.dimension_semantics<parallel>], iteration_bounds = array<i64: 4>, scalar_prefetch = 0 : i64, scratch_operands = 1 : i64, tpu.core_type = #tpu.core_type<tc>, window_params = [{transform_indices = @transform_0, window_bounds = array<i64: 1, 16, 32>}, {pipeline_mode = #tpu.pipeline_mode<synchronous>, transform_indices = @transform_1, window_bounds = array<i64: 32, 96>}, {pipeline_mode = #tpu.pipeline_mode<synchronous>, transform_indices = @transform_2, window_bounds = array<i64: 1, 32>}, {pipeline_mode = #tpu.pipeline_mode<synchronous>, transform_indices = @transform_3, window_bounds = array<i64: 24, 16>}, {pipeline_mode = #tpu.pipeline_mode<synchronous>, transform_indices = @transform_4, window_bounds = array<i64: 8, 24>}, {transform_indices = @transform_5, window_bounds = array<i64: 1, 8, 32>}]} {
    %c0 = arith.constant 0 : index
    %c0_0 = arith.constant 0 : index
    %c0_1 = arith.constant 0 : index
    %0 = vector.load %arg1[%c0, %c0_0, %c0_1] : memref<1x16x32xf32, #tpu.memory_space<vmem>>, vector<1x16x32xf32>
    %1 = vector.shape_cast %0 : vector<1x16x32xf32> to vector<16x32xf32>
    %c0_2 = arith.constant 0 : index
    %c0_3 = arith.constant 0 : index
    %2 = vector.load %arg2[%c0_2, %c0_3] : memref<32x96xf32, #tpu.memory_space<vmem>>, vector<32x96xf32>
    %cst = arith.constant dense<0.000000e+00> : vector<16x96xf32>
    %3 = tpu.matmul %1, %2, %cst {dimension_numbers = #tpu.dot_dimension_numbers<[1], [0], [0], [1], [0, 0, 1, 1], [], []>, precision = #tpu.contract_precision<fp32>} : vector<16x32xf32>, vector<32x96xf32>, vector<16x96xf32> -> vector<16x96xf32>
    %4 = vector.extract_strided_slice %3 {offsets = [0, 0], sizes = [16, 64], strides = [1, 1]} : vector<16x96xf32> to vector<16x64xf32>
    %5 = vector.extract_strided_slice %3 {offsets = [0, 64], sizes = [8, 32], strides = [1, 1]} : vector<16x96xf32> to vector<8x32xf32>
    %c0_4 = arith.constant 0 : index
    %c0_5 = arith.constant 0 : index
    %6 = vector.load %arg4[%c0_4, %c0_5] : memref<24x16xf32, #tpu.memory_space<vmem>>, vector<24x16xf32>
    %cst_6 = arith.constant dense<0.000000e+00> : vector<24x64xf32>
    %7 = tpu.matmul %6, %4, %cst_6 {dimension_numbers = #tpu.dot_dimension_numbers<[1], [0], [0], [1], [0, 0, 1, 1], [], []>, precision = #tpu.contract_precision<fp32>} : vector<24x16xf32>, vector<16x64xf32>, vector<24x64xf32> -> vector<24x64xf32>
    %8 = vector.extract_strided_slice %7 {offsets = [0, 0], sizes = [24, 32], strides = [1, 1]} : vector<24x64xf32> to vector<24x32xf32>
    %9 = vector.extract_strided_slice %7 {offsets = [0, 32], sizes = [24, 32], strides = [1, 1]} : vector<24x64xf32> to vector<24x32xf32>
    %cst_7 = arith.constant 0.000000e+00 : f32
    %10 = vector.broadcast %cst_7 : f32 to vector<24x32xf32>
    %11 = arith.cmpf ogt, %8, %10 : vector<24x32xf32>
    %cst_8 = arith.constant 2.000000e-01 : f32
    %12 = vector.broadcast %cst_8 : f32 to vector<24x32xf32>
    %13 = arith.mulf %12, %8 : vector<24x32xf32>
    %14 = arith.select %11, %8, %13 : vector<24x32xi1>, vector<24x32xf32>
    %cst_9 = arith.constant 6.000000e+01 : f32
    %15 = vector.broadcast %cst_9 : f32 to vector<24x32xf32>
    %16 = arith.minimumf %14, %15 : vector<24x32xf32>
    %17 = math.exp %16 : vector<24x32xf32>
    %c0_10 = arith.constant 0 : index
    %c0_11 = arith.constant 0 : index
    %18 = vector.load %arg7[%c0_10, %c0_11] : memref<24x64xf32, #tpu.memory_space<vmem>>, vector<24x32xf32>
    tpu.vector_store %arg7[%c0_10, %c0_11], %17 {strides = array<i32>} : memref<24x64xf32, #tpu.memory_space<vmem>>, vector<24x32xf32>,
    %19 = arith.mulf %17, %9 : vector<24x32xf32>
    %c0_12 = arith.constant 0 : index
    %c32 = arith.constant 32 : index
    %20 = vector.load %arg7[%c0_12, %c32] : memref<24x64xf32, #tpu.memory_space<vmem>>, vector<24x32xf32>
    tpu.vector_store %arg7[%c0_12, %c32], %19 {strides = array<i32>} : memref<24x64xf32, #tpu.memory_space<vmem>>, vector<24x32xf32>,
    %c0_13 = arith.constant 0 : index
    %c0_14 = arith.constant 0 : index
    %21 = vector.load %arg5[%c0_13, %c0_14] : memref<8x24xf32, #tpu.memory_space<vmem>>, vector<8x24xf32>
    %c0_15 = arith.constant 0 : index
    %c0_16 = arith.constant 0 : index
    %22 = vector.load %arg7[%c0_15, %c0_16] : memref<24x64xf32, #tpu.memory_space<vmem>>, vector<24x64xf32>
    %cst_17 = arith.constant dense<0.000000e+00> : vector<8x64xf32>
    %23 = tpu.matmul %21, %22, %cst_17 {dimension_numbers = #tpu.dot_dimension_numbers<[1], [0], [0], [1], [0, 0, 1, 1], [], []>, precision = #tpu.contract_precision<fp32>} : vector<8x24xf32>, vector<24x64xf32>, vector<8x64xf32> -> vector<8x64xf32>
    %24 = vector.extract_strided_slice %23 {offsets = [0, 0], sizes = [8, 32], strides = [1, 1]} : vector<8x64xf32> to vector<8x32xf32>
    %25 = vector.extract_strided_slice %23 {offsets = [0, 32], sizes = [8, 32], strides = [1, 1]} : vector<8x64xf32> to vector<8x32xf32>
    %cst_18 = arith.constant 1.000000e-16 : f32
    %26 = vector.broadcast %cst_18 : f32 to vector<8x32xf32>
    %27 = arith.addf %24, %26 : vector<8x32xf32>
    %28 = arith.divf %25, %27 : vector<8x32xf32>
    %29 = arith.addf %28, %5 : vector<8x32xf32>
    %c0_19 = arith.constant 0 : index
    %c0_20 = arith.constant 0 : index
    %30 = vector.load %arg3[%c0_19, %c0_20] : memref<1x32xf32, #tpu.memory_space<vmem>>, vector<1x32xf32>
    %31 = vector.broadcast %30 : vector<1x32xf32> to vector<8x32xf32>
    %32 = arith.addf %29, %31 : vector<8x32xf32>
    %cst_21 = arith.constant 0.000000e+00 : f32
    %33 = vector.broadcast %cst_21 : f32 to vector<8x32xf32>
    %34 = arith.cmpf ogt, %32, %33 : vector<8x32xf32>
    %cst_22 = arith.constant 0.000000e+00 : f32
    %35 = vector.broadcast %cst_22 : f32 to vector<8x32xf32>
    %36 = arith.minimumf %32, %35 : vector<8x32xf32>
    %37 = math.exp %36 : vector<8x32xf32>
    %cst_23 = arith.constant 1.000000e+00 : f32
    %38 = vector.broadcast %cst_23 : f32 to vector<8x32xf32>
    %39 = arith.subf %37, %38 : vector<8x32xf32>
    %40 = arith.select %34, %32, %39 : vector<8x32xi1>, vector<8x32xf32>
    %c0_24 = arith.constant 0 : index
    %c0_25 = arith.constant 0 : index
    %c0_26 = arith.constant 0 : index
    %41 = vector.load %arg6[%c0_24, %c0_25, %c0_26] : memref<1x8x32xf32, #tpu.memory_space<vmem>>, vector<1x8x32xf32>
    %42 = vector.shape_cast %41 : vector<1x8x32xf32> to vector<8x32xf32>
    %43 = vector.shape_cast %40 : vector<8x32xf32> to vector<1x8x32xf32>
    tpu.vector_store %arg6[%c0_24, %c0_25, %c0_26], %43 {strides = array<i32>} : memref<1x8x32xf32, #tpu.memory_space<vmem>>, vector<1x8x32xf32>,
    return
  }
  func.func @transform_0(%arg0: i32) -> (i32, i32, i32) {
    %c0_i32 = arith.constant 0 : i32
    %c0_i32_0 = arith.constant 0 : i32
    %c0_i32_1 = arith.constant 0 : i32
    return %arg0, %c0_i32, %c0_i32_0 : i32, i32, i32
  }
  func.func @transform_1(%arg0: i32) -> (i32, i32) {
    %c0_i32 = arith.constant 0 : i32
    %c0_i32_0 = arith.constant 0 : i32
    %c0_i32_1 = arith.constant 0 : i32
    return %c0_i32, %c0_i32_0 : i32, i32
  }
  func.func @transform_2(%arg0: i32) -> (i32, i32) {
    %c0_i32 = arith.constant 0 : i32
    %c0_i32_0 = arith.constant 0 : i32
    %c0_i32_1 = arith.constant 0 : i32
    return %c0_i32, %c0_i32_0 : i32, i32
  }
  func.func @transform_3(%arg0: i32) -> (i32, i32) {
    %c0_i32 = arith.constant 0 : i32
    %c0_i32_0 = arith.constant 0 : i32
    %c0_i32_1 = arith.constant 0 : i32
    return %c0_i32, %c0_i32_0 : i32, i32
  }
  func.func @transform_4(%arg0: i32) -> (i32, i32) {
    %c0_i32 = arith.constant 0 : i32
    %c0_i32_0 = arith.constant 0 : i32
    %c0_i32_1 = arith.constant 0 : i32
    return %c0_i32, %c0_i32_0 : i32, i32
  }
  func.func @transform_5(%arg0: i32) -> (i32, i32, i32) {
    %c0_i32 = arith.constant 0 : i32
    %c0_i32_0 = arith.constant 0 : i32
    %c0_i32_1 = arith.constant 0 : i32
    return %arg0, %c0_i32, %c0_i32_0 : i32, i32, i32
  }
}

</mosaic_0001>

<llo_original>
// kernel: tpu_custom_call.1
$region0: #{tpu_custom_call.1}
  #allocation0 [shape = 'u32[]', space=smem, size = 0x4, offset = 0x4, fixed_abs, tag = 'smem constant byte address 0x4 - core index']
  #allocation1 [shape = 'u32[144,128]{1,0:T(1,128)}', space=vmem, size = 0x12000, scoped, tag = 'internal scratch']
  #allocation2 [shape = 'f32[24,64]{1,0:T(8,128)}', space=vmem, size = 0x3000, scoped, tag = 'scratch operand']
  %s0 = inlined_call_operand.hbm [shape: f32[4,16,32], index: 0, kind: input, shape index: {}]
  %s1 = inlined_call_operand.vmem [shape: f32[32,96], index: 1, kind: input, shape index: {}]
  %s2 = inlined_call_operand.vmem [shape: f32[1,32], index: 2, kind: input, shape index: {}]
  %s3 = inlined_call_operand.vmem [shape: f32[24,16], index: 3, kind: input, shape index: {}]
  %s4 = inlined_call_operand.vmem [shape: f32[8,24], index: 4, kind: input, shape index: {}]
  %s5 = inlined_call_operand.hbm [shape: f32[4,8,32], index: 5, kind: output, shape index: {}]
  %s6 = sld [smem:[#allocation0]]
  $region57: #{tpu_custom_call.1} parent=0
    _
  %s8 = ssub.s32 1, %s6
  %s9 = scalar_select 0, %s8, %s6
  $region1: #{tpu_custom_call.1} parent=0
    #allocation3 [shape = 'u8[16384]{0}', space=vmem, size = 0x4000, scoped, tag = 'input window, operand 0']
    #allocation4 [shape = 's32[2]{0}', space=sflag, size = 0x8, scoped, tag = 'scoped memory for tpu_custom_call.1']
    #allocation5 [shape = 's32[2]{0}', space=sflag, size = 0x8, scoped, tag = 'scoped memory for tpu_custom_call.1']
    #allocation6 [shape = 'u8[8192]{0}', space=vmem, size = 0x2000, scoped, tag = 'output window, operand 0']
    %10 = vsyncpa [#allocation4], 0
    %s11 = scalar_lea.sflag [#allocation4], 1
    %12 = vsyncpa %s11, 0
    %13 = vsyncpa [#allocation5], 0
    %s14 = scalar_lea.sflag [#allocation5], 1
    %15 = vsyncpa %s14, 0
    loop: start=0, step=1, limit=6
    $region2: #{tpu_custom_call.1} parent=1 // loop_pre_header
      _
    $region3: #{tpu_custom_call.1} parent=1 // loop_header
      %s17 = sphi 0, %s21
      %p18 = scmp.ge.s32.totalorder %s17, 6
      %s27 = sphi 0, %s29
      %s30 = sphi 0, %s27
      %s31 = sphi 0, %s30
      %s47 = sphi 0, %s31
      %s51 = sphi 0, %s51
      %s53 = sphi 0, %s51
      %s54 = sphi 0, %s53
      %s68 = sphi 0, %s54
      %s72 = sphi 0, %s72
      %s74 = sphi 0, %s72
      %s75 = sphi 0, %s74
      %s89 = sphi 0, %s75
      %s93 = sphi 0, %s93
      %s95 = sphi 0, %s93
      %s96 = sphi 0, %s95
      %s110 = sphi 0, %s96
      %s114 = sphi 0, %s114
      %s116 = sphi 0, %s114
      %s117 = sphi 0, %s116
      %s131 = sphi 0, %s117
      %s137 = sphi 0, %s139
      %s140 = sphi 0, %s137
      %s141 = sphi 0, %s140
      %s157 = sphi 0, %s141
    $region4: #{tpu_custom_call.1} parent=1 // loop_header_branch
      %20 = sbr.rel (%p18) target = $region8
    $region5: #{tpu_custom_call.1} parent=1 // loop_body
      %s22 = ssub.s32 %s17, 1
      %s23 = ssub.s32 %s17, 2
      %s24 = sadd.s32 %s17, 1
      %s25 = ssub.s32 %s17, %s24
      %p26 = scmp.eq.s32.totalorder %s25, 0
      %s28 = sadd.s32 %s27, 1
      %s29 = scalar_select %p26, %s27, %s28
      %p32 = pneg %p26
      %p33 = scmp.eq.s32.totalorder %s17, 3
      %p34 = por %p32, %p33
      %p35 = scmp.ne.s32.totalorder %s27, %s30
      %p36 = scmp.eq.s32.totalorder %s17, 0
      %p37 = por %p35, %p36
      %p38 = scmp.ne.s32.totalorder %s27, %s30
      %p39 = scmp.eq.s32.totalorder %s22, 3
      %p40 = por %p38, %p39
      %p41 = scmp.ne.s32.totalorder %s30, %s31
      %p42 = scmp.eq.s32.totalorder %s22, 0
      %p43 = por %p41, %p42
      %p44 = scmp.ne.s32.totalorder %s30, %s31
      %p45 = scmp.eq.s32.totalorder %s23, 3
      %p46 = por %p44, %p45
      %p48 = scmp.ne.s32.totalorder %s31, %s47
      %p49 = scmp.eq.s32.totalorder %s23, 0
      %p50 = por %p48, %p49
      %s52 = sadd.s32 %s51, 1
      %p55 = scmp.eq.s32.totalorder %s17, 3
      %p56 = scmp.ne.s32.totalorder %s51, %s53
      %p57 = scmp.eq.s32.totalorder %s17, 0
      %p58 = por %p56, %p57
      %p59 = scmp.ne.s32.totalorder %s51, %s53
      %p60 = scmp.eq.s32.totalorder %s22, 3
      %p61 = por %p59, %p60
      %p62 = scmp.ne.s32.totalorder %s53, %s54
      %p63 = scmp.eq.s32.totalorder %s22, 0
      %p64 = por %p62, %p63
      %p65 = scmp.ne.s32.totalorder %s53, %s54
      %p66 = scmp.eq.s32.totalorder %s23, 3
      %p67 = por %p65, %p66
      %p69 = scmp.ne.s32.totalorder %s54, %s68
      %p70 = scmp.eq.s32.totalorder %s23, 0
      %p71 = por %p69, %p70
      %s73 = sadd.s32 %s72, 1
      %p76 = scmp.eq.s32.totalorder %s17, 3
      %p77 = scmp.ne.s32.totalorder %s72, %s74
      %p78 = scmp.eq.s32.totalorder %s17, 0
      %p79 = por %p77, %p78
      %p80 = scmp.ne.s32.totalorder %s72, %s74
      %p81 = scmp.eq.s32.totalorder %s22, 3
      %p82 = por %p80, %p81
      %p83 = scmp.ne.s32.totalorder %s74, %s75
      %p84 = scmp.eq.s32.totalorder %s22, 0
      %p85 = por %p83, %p84
      %p86 = scmp.ne.s32.totalorder %s74, %s75
      %p87 = scmp.eq.s32.totalorder %s23, 3
      %p88 = por %p86, %p87
      %p90 = scmp.ne.s32.totalorder %s75, %s89
      %p91 = scmp.eq.s32.totalorder %s23, 0
      %p92 = por %p90, %p91
      %s94 = sadd.s32 %s93, 1
      %p97 = scmp.eq.s32.totalorder %s17, 3
      %p98 = scmp.ne.s32.totalorder %s93, %s95
      %p99 = scmp.eq.s32.totalorder %s17, 0
      %p100 = por %p98, %p99
      %p101 = scmp.ne.s32.totalorder %s93, %s95
      %p102 = scmp.eq.s32.totalorder %s22, 3
      %p103 = por %p101, %p102
      %p104 = scmp.ne.s32.totalorder %s95, %s96
      %p105 = scmp.eq.s32.totalorder %s22, 0
      %p106 = por %p104, %p105
      %p107 = scmp.ne.s32.totalorder %s95, %s96
      %p108 = scmp.eq.s32.totalorder %s23, 3
      %p109 = por %p107, %p108
      %p111 = scmp.ne.s32.totalorder %s96, %s110
      %p112 = scmp.eq.s32.totalorder %s23, 0
      %p113 = por %p111, %p112
      %s115 = sadd.s32 %s114, 1
      %p118 = scmp.eq.s32.totalorder %s17, 3
      %p119 = scmp.ne.s32.totalorder %s114, %s116
      %p120 = scmp.eq.s32.totalorder %s17, 0
      %p121 = por %p119, %p120
      %p122 = scmp.ne.s32.totalorder %s114, %s116
      %p123 = scmp.eq.s32.totalorder %s22, 3
      %p124 = por %p122, %p123
      %p125 = scmp.ne.s32.totalorder %s116, %s117
      %p126 = scmp.eq.s32.totalorder %s22, 0
      %p127 = por %p125, %p126
      %p128 = scmp.ne.s32.totalorder %s116, %s117
      %p129 = scmp.eq.s32.totalorder %s23, 3
      %p130 = por %p128, %p129
      %p132 = scmp.ne.s32.totalorder %s117, %s131
      %p133 = scmp.eq.s32.totalorder %s23, 0
      %p134 = por %p132, %p133
      %s135 = ssub.s32 %s17, %s24
      %p136 = scmp.eq.s32.totalorder %s135, 0
      %s138 = sadd.s32 %s137, 1
      %s139 = scalar_select %p136, %s137, %s138
      %p142 = pneg %p136
      %p143 = scmp.eq.s32.totalorder %s17, 3
      %p144 = por %p142, %p143
      %p145 = scmp.ne.s32.totalorder %s137, %s140
      %p146 = scmp.eq.s32.totalorder %s17, 0
      %p147 = por %p145, %p146
      %p148 = scmp.ne.s32.totalorder %s137, %s140
      %p149 = scmp.eq.s32.totalorder %s22, 3
      %p150 = por %p148, %p149
      %p151 = scmp.ne.s32.totalorder %s140, %s141
      %p152 = scmp.eq.s32.totalorder %s22, 0
      %p153 = por %p151, %p152
      %p154 = scmp.ne.s32.totalorder %s140, %s141
      %p155 = scmp.eq.s32.totalorder %s23, 3
      %p156 = por %p154, %p155
      %p158 = scmp.ne.s32.totalorder %s141, %s157
      %p159 = scmp.eq.s32.totalorder %s23, 0
      %p160 = por %p158, %p159
      %p161 = scmp.le.s32.totalorder 1, %s17
      %p162 = scmp.lt.s32.totalorder %s17, 5
      %p163 = pnand %p161, %p162
      %p164 = pneg %p163
      // Predicated region
      $region9: #{tpu_custom_call.1} parent=5 // pred_check
        _
      $region10: #{tpu_custom_call.1} parent=5 // pred_check_branch
        %166 = sbr.rel (%p163) target = $region12
      $region11: #{tpu_custom_call.1} parent=5 // pred_region
        %s167 = ssub.s32 %s17, 1
        // Predicated region
        $region13: #{tpu_custom_call.1} parent=11 // pred_check
          %p168 = pneg %p64
        $region14: #{tpu_custom_call.1} parent=11 // pred_check_branch
          %170 = sbr.rel (%p168) target = $region16
        $region15: #{tpu_custom_call.1} parent=11 // pred_region
          _
        $region16: #{tpu_custom_call.1} parent=11 // pred_fallthru
          _
        // Predicated region
        $region17: #{tpu_custom_call.1} parent=11 // pred_check
          %p171 = pneg %p85
        $region18: #{tpu_custom_call.1} parent=11 // pred_check_branch
          %173 = sbr.rel (%p171) target = $region20
        $region19: #{tpu_custom_call.1} parent=11 // pred_region
          _
        $region20: #{tpu_custom_call.1} parent=11 // pred_fallthru
          _
        // Predicated region
        $region21: #{tpu_custom_call.1} parent=11 // pred_check
          %p174 = pneg %p106
        $region22: #{tpu_custom_call.1} parent=11 // pred_check_branch
          %176 = sbr.rel (%p174) target = $region24
        $region23: #{tpu_custom_call.1} parent=11 // pred_region
          _
        $region24: #{tpu_custom_call.1} parent=11 // pred_fallthru
          _
        // Predicated region
        $region25: #{tpu_custom_call.1} parent=11 // pred_check
          %p177 = pneg %p127
        $region26: #{tpu_custom_call.1} parent=11 // pred_check_branch
          %179 = sbr.rel (%p177) target = $region28
        $region27: #{tpu_custom_call.1} parent=11 // pred_region
          _
        $region28: #{tpu_custom_call.1} parent=11 // pred_fallthru
          _
      $region12: #{tpu_custom_call.1} parent=5 // pred_fallthru
        _
      %p180 = scmp.lt.s32.totalorder %s17, 4
      // Predicated region
      $region29: #{tpu_custom_call.1} parent=5 // pred_check
        %p181 = pneg %p180
      $region30: #{tpu_custom_call.1} parent=5 // pred_check_branch
        %183 = sbr.rel (%p181) target = $region32
      $region31: #{tpu_custom_call.1} parent=5 // pred_region
        // Predicated region
        $region33: #{tpu_custom_call.1} parent=31 // pred_check
          %p184 = pneg %p37
        $region34: #{tpu_custom_call.1} parent=31 // pred_check_branch
          %186 = sbr.rel (%p184) target = $region36
        $region35: #{tpu_custom_call.1} parent=31 // pred_region
          %s187 = sand.u32 %s27, 1
          %s188 = scalar_lea.sflag [#allocation4], %s187
          %s189 = sand.u32 %s27, 1
          %s190 = smul.addr %s189, 16
          %s191 = scalar_lea.vmem [#allocation3], %s190
          %s193 = ssub.s32 256, 256
          %194 = vsyncadd %s188, %s193
          %s195 = smul.addr %s17, 2
          %s196 = smul.addr %s195, 128
          %s197 = scalar_lea.hbm %s0, %s196
          %s198 = sshll.u32 %s191, 4
          %s199 = int_to_ptr.vmem [resolvable:$true] %s198
          %204 = dma.hbm_to_vmem [thread:$0]  %s197, 256, %s199, %s188, 128, 128, 8
        $region36: #{tpu_custom_call.1} parent=31 // pred_fallthru
          _
      $region32: #{tpu_custom_call.1} parent=5 // pred_fallthru
        _
      %p205 = scmp.le.s32.totalorder 1, %s17
      %p206 = scmp.lt.s32.totalorder %s17, 5
      %p207 = pnand %p205, %p206
      %p208 = pneg %p207
      // Predicated region
      $region37: #{tpu_custom_call.1} parent=5 // pred_check
        _
      $region38: #{tpu_custom_call.1} parent=5 // pred_check_branch
        %210 = sbr.rel (%p207) target = $region40
      $region39: #{tpu_custom_call.1} parent=5 // pred_region
        %s211 = ssub.s32 %s17, 1
        %s212 = sand.u32 %s30, 1
        %s213 = scalar_lea.sflag [#allocation4], %s212
        %s214 = sand.u32 %s30, 1
        %s215 = smul.addr %s214, 16
        %s216 = scalar_lea.vmem [#allocation3], %s215
        // Predicated region
        $region41: #{tpu_custom_call.1} parent=39 // pred_check
          %p217 = pneg %p43
        $region42: #{tpu_custom_call.1} parent=39 // pred_check_branch
          %219 = sbr.rel (%p217) target = $region44
        $region43: #{tpu_custom_call.1} parent=39 // pred_region
          %220 = dma.done %s213, 256
        $region44: #{tpu_custom_call.1} parent=39 // pred_fallthru
          _
        %s221 = sand.u32 %s30, 1
        %s222 = scalar_lea.sflag [#allocation4], %s221
        %s223 = sand.u32 %s30, 1
        %s224 = smul.addr %s223, 16
        %s225 = scalar_lea.vmem [#allocation3], %s224
        %p226 = pneg %p43
        %p227 = pneg %p40
        %p228 = pneg %p64
        %p229 = pneg %p61
        %p230 = pneg %p85
        %p231 = pneg %p82
        %p232 = pneg %p106
        %p233 = pneg %p103
        %p234 = pneg %p127
        %p235 = pneg %p124
        %p236 = pneg %p153
        %p237 = pneg %p150
        %s238 = sand.u32 %s140, 1
        %s239 = scalar_lea.sflag [#allocation5], %s238
        %s240 = sand.u32 %s140, 1
        %s241 = smul.addr %s240, 8
        %s242 = scalar_lea.vmem [#allocation6], %s241
        %v243 = vld [vmem:[%s216] sm:$0xff]
        %v244 = vld [vmem:[%s216 + $0x8] sm:$0xff]
        %v245 = vld [vmem:[%s1] sm:$0xff]
        %v246 = vld [vmem:[%s1 + $0x8] sm:$0xff]
        %v247 = vld [vmem:[%s1 + $0x10] sm:$0xff]
        %v248 = vld [vmem:[%s1 + $0x18] sm:$0xff]
        %vm249 = vcmask 261120
        %v251 = vsel %vm249, %v243, 0
        %v254 = vsel %vm249, %v244, 0
        %256 = vmatprep.subr.mxu0 0.0
        %257 = vmatpush1.msra.mxu0 0.0
        %258 = vmatprep.subr.mxu0 0.0
        %259 = vmatpush1.msra.mxu0 0.0
        %260 = vmatprep.subr.mxu0 0.0
        %261 = vmatpush1.msra.mxu0 0.0
        %262 = vmatprep.subr.mxu0 0.0
        %263 = vmatpush1.msra.mxu0 0.0
        %264 = vmatprep.subr.mxu0 0.0
        %265 = vmatpush1.msra.mxu0 0.0
        %266 = vmatprep.subr.mxu0 0.0
        %267 = vmatpush1.msra.mxu0 0.0
        %268 = vmatprep.subr.mxu0 0.0
        %269 = vmatpush1.msra.mxu0 0.0
        %270 = vmatprep.subr.mxu0 0.0
        %271 = vmatpush1.msra.mxu0 0.0
        %272 = vmatprep.subr.mxu0 0.0
        %273 = vmatpush1.msra.mxu0 0.0
        %274 = vmatprep.subr.mxu0 0.0
        %275 = vmatpush1.msra.mxu0 0.0
        %276 = vmatprep.subr.mxu0 0.0
        %277 = vmatpush1.msra.mxu0 0.0
        %278 = vmatprep.subr.mxu0 0.0
        %279 = vmatpush1.msra.mxu0 0.0
        %280 = vmatprep.subr.mxu0 0.0
        %v281 = vand.u32 %v248, 4294901760
        %282 = vmatpush1.msra.mxu0 %v281
        %283 = vmatprep.subr.mxu0 0.0
        %v284 = vand.u32 %v247, 4294901760
        %285 = vmatpush1.msra.mxu0 %v284
        %286 = vmatprep.subr.mxu0 0.0
        %v287 = vand.u32 %v246, 4294901760
        %288 = vmatpush1.msra.mxu0 %v287
        %289 = vmatprep.subr.mxu0 0.0
        %v290 = vand.u32 %v245, 4294901760
        %291 = vmatpush1.msra.mxu0 %v290
        %292 = vmatprep.subr.mxu0 0.0
        %293 = vmatpush2.msra.mxu0 0.0
        %294 = vmatprep.subr.mxu0 0.0
        %295 = vmatpush2.msra.mxu0 0.0
        %296 = vmatprep.subr.mxu0 0.0
        %297 = vmatpush2.msra.mxu0 0.0
        %298 = vmatprep.subr.mxu0 0.0
        %299 = vmatpush2.msra.mxu0 0.0
        %300 = vmatprep.subr.mxu0 0.0
        %301 = vmatpush2.msra.mxu0 0.0
        %302 = vmatprep.subr.mxu0 0.0
        %303 = vmatpush2.msra.mxu0 0.0
        %304 = vmatprep.subr.mxu0 0.0
        %305 = vmatpush2.msra.mxu0 0.0
        %306 = vmatprep.subr.mxu0 0.0
        %307 = vmatpush2.msra.mxu0 0.0
        %308 = vmatprep.subr.mxu0 0.0
        %309 = vmatpush2.msra.mxu0 0.0
        %310 = vmatprep.subr.mxu0 0.0
        %311 = vmatpush2.msra.mxu0 0.0
        %312 = vmatprep.subr.mxu0 0.0
        %313 = vmatpush2.msra.mxu0 0.0
        %314 = vmatprep.subr.mxu0 0.0
        %315 = vmatpush2.msra.mxu0 0.0
        %316 = vmatprep.subr.mxu0 0.0
        %317 = vmatpush2.msra.mxu0 0.0
        %318 = vmatprep.subr.mxu0 0.0
        %319 = vmatpush2.msra.mxu0 0.0
        %320 = vmatprep.subr.mxu0 0.0
        %321 = vmatpush2.msra.mxu0 0.0
        %322 = vmatprep.subr.mxu0 0.0
        %323 = vmatpush2.msra.mxu0 0.0
        %324 = vmatprep.mubr.f32.mxu0 0.0
        %v325 = vand.u32 %v251, 4294901760
        %v326 = vsub.f32 %v251, %v325
        %v327 = vand.u32 %v326, 4294901760
        %v328 = vsub.f32 %v326, %v327
        %v329 = vand.u32 %v328, 4294901760
        %330 = vmatmul.mubr.f32.gmra.mxu0 %v329
        %v331 = vpop.f32.mrf.mxu0
        %v332 = vadd.f32 0.0, %v331
        %v333 = vpop.f32.mrf.mxu0
        %334 = vmatprep.mubr.f32.mxu0 0.0
        %v335 = vand.u32 %v254, 4294901760
        %v336 = vsub.f32 %v254, %v335
        %v337 = vand.u32 %v336, 4294901760
        %v338 = vsub.f32 %v336, %v337
        %v339 = vand.u32 %v338, 4294901760
        %340 = vmatmul.mubr.f32.gmra.mxu0 %v339
        %v341 = vpop.f32.mrf.mxu0
        %v342 = vadd.f32 0.0, %v341
        %v343 = vpop.f32.mrf.mxu0
        %344 = vdwg.mxu0
        %345 = vmatprep.subr.mxu0 0.0
        %346 = vmatpush1.msra.mxu0 0.0
        %347 = vmatprep.subr.mxu0 0.0
        %348 = vmatpush1.msra.mxu0 0.0
        %349 = vmatprep.subr.mxu0 0.0
        %350 = vmatpush1.msra.mxu0 0.0
        %351 = vmatprep.subr.mxu0 0.0
        %352 = vmatpush1.msra.mxu0 0.0
        %353 = vmatprep.subr.mxu0 0.0
        %354 = vmatpush1.msra.mxu0 0.0
        %355 = vmatprep.subr.mxu0 0.0
        %356 = vmatpush1.msra.mxu0 0.0
        %357 = vmatprep.subr.mxu0 0.0
        %358 = vmatpush1.msra.mxu0 0.0
        %359 = vmatprep.subr.mxu0 0.0
        %360 = vmatpush1.msra.mxu0 0.0
        %361 = vmatprep.subr.mxu0 0.0
        %362 = vmatpush1.msra.mxu0 0.0
        %363 = vmatprep.subr.mxu0 0.0
        %364 = vmatpush1.msra.mxu0 0.0
        %365 = vmatprep.subr.mxu0 0.0
        %366 = vmatpush1.msra.mxu0 0.0
        %367 = vmatprep.subr.mxu0 0.0
        %368 = vmatpush1.msra.mxu0 0.0
        %369 = vmatprep.subr.mxu0 0.0
        %v370 = vand.u32 %v248, 4294901760
        %v371 = vsub.f32 %v248, %v370
        %v372 = vand.u32 %v371, 4294901760
        %v373 = vsub.f32 %v371, %v372
        %v374 = vand.u32 %v373, 4294901760
        %375 = vmatpush1.msra.mxu0 %v374
        %376 = vmatprep.subr.mxu0 0.0
        %v377 = vand.u32 %v247, 4294901760
        %v378 = vsub.f32 %v247, %v377
        %v379 = vand.u32 %v378, 4294901760
        %v380 = vsub.f32 %v378, %v379
        %v381 = vand.u32 %v380, 4294901760
        %382 = vmatpush1.msra.mxu0 %v381
        %383 = vmatprep.subr.mxu0 0.0
        %v384 = vand.u32 %v246, 4294901760
        %v385 = vsub.f32 %v246, %v384
        %v386 = vand.u32 %v385, 4294901760
        %v387 = vsub.f32 %v385, %v386
        %v388 = vand.u32 %v387, 4294901760
        %389 = vmatpush1.msra.mxu0 %v388
        %390 = vmatprep.subr.mxu0 0.0
        %v391 = vand.u32 %v245, 4294901760
        %v392 = vsub.f32 %v245, %v391
        %v393 = vand.u32 %v392, 4294901760
        %v394 = vsub.f32 %v392, %v393
        %v395 = vand.u32 %v394, 4294901760
        %396 = vmatpush1.msra.mxu0 %v395
        %397 = vmatprep.subr.mxu0 0.0
        %398 = vmatpush2.msra.mxu0 0.0
        %399 = vmatprep.subr.mxu0 0.0
        %400 = vmatpush2.msra.mxu0 0.0
        %401 = vmatprep.subr.mxu0 0.0
        %402 = vmatpush2.msra.mxu0 0.0
        %403 = vmatprep.subr.mxu0 0.0
        %404 = vmatpush2.msra.mxu0 0.0
        %405 = vmatprep.subr.mxu0 0.0
        %406 = vmatpush2.msra.mxu0 0.0
        %407 = vmatprep.subr.mxu0 0.0
        %408 = vmatpush2.msra.mxu0 0.0
        %409 = vmatprep.subr.mxu0 0.0
        %410 = vmatpush2.msra.mxu0 0.0
        %411 = vmatprep.subr.mxu0 0.0
        %412 = vmatpush2.msra.mxu0 0.0
        %413 = vmatprep.subr.mxu0 0.0
        %414 = vmatpush2.msra.mxu0 0.0
        %415 = vmatprep.subr.mxu0 0.0
        %416 = vmatpush2.msra.mxu0 0.0
        %417 = vmatprep.subr.mxu0 0.0
        %418 = vmatpush2.msra.mxu0 0.0
        %419 = vmatprep.subr.mxu0 0.0
        %420 = vmatpush2.msra.mxu0 0.0
        %421 = vmatprep.subr.mxu0 0.0
        %422 = vmatpush2.msra.mxu0 0.0
        %423 = vmatprep.subr.mxu0 0.0
        %424 = vmatpush2.msra.mxu0 0.0
        %425 = vmatprep.subr.mxu0 0.0
        %426 = vmatpush2.msra.mxu0 0.0
        %427 = vmatprep.subr.mxu0 0.0
        %428 = vmatpush2.msra.mxu0 0.0
        %429 = vmatprep.mubr.f32.mxu0 0.0
        %v430 = vand.u32 %v251, 4294901760
        %431 = vmatmul.mubr.f32.gmra.mxu0 %v430
        %v432 = vpop.f32.mrf.mxu0
        %v433 = vadd.f32 %v332, %v432
        %v434 = vpop.f32.mrf.mxu0
        %435 = vmatprep.mubr.f32.mxu0 0.0
        %v436 = vand.u32 %v254, 4294901760
        %437 = vmatmul.mubr.f32.gmra.mxu0 %v436
        %v438 = vpop.f32.mrf.mxu0
        %v439 = vadd.f32 %v342, %v438
        %v440 = vpop.f32.mrf.mxu0
        %441 = vdwg.mxu0
        %442 = vmatprep.subr.mxu0 0.0
        %443 = vmatpush1.msra.mxu0 0.0
        %444 = vmatprep.subr.mxu0 0.0
        %445 = vmatpush1.msra.mxu0 0.0
        %446 = vmatprep.subr.mxu0 0.0
        %447 = vmatpush1.msra.mxu0 0.0
        %448 = vmatprep.subr.mxu0 0.0
        %449 = vmatpush1.msra.mxu0 0.0
        %450 = vmatprep.subr.mxu0 0.0
        %451 = vmatpush1.msra.mxu0 0.0
        %452 = vmatprep.subr.mxu0 0.0
        %453 = vmatpush1.msra.mxu0 0.0
        %454 = vmatprep.subr.mxu0 0.0
        %455 = vmatpush1.msra.mxu0 0.0
        %456 = vmatprep.subr.mxu0 0.0
        %457 = vmatpush1.msra.mxu0 0.0
        %458 = vmatprep.subr.mxu0 0.0
        %459 = vmatpush1.msra.mxu0 0.0
        %460 = vmatprep.subr.mxu0 0.0
        %461 = vmatpush1.msra.mxu0 0.0
        %462 = vmatprep.subr.mxu0 0.0
        %463 = vmatpush1.msra.mxu0 0.0
        %464 = vmatprep.subr.mxu0 0.0
        %465 = vmatpush1.msra.mxu0 0.0
        %466 = vmatprep.subr.mxu0 0.0
        %v467 = vand.u32 %v248, 4294901760
        %v468 = vsub.f32 %v248, %v467
        %469 = vmatpush1.msra.mxu0 %v468
        %470 = vmatprep.subr.mxu0 0.0
        %v471 = vand.u32 %v247, 4294901760
        %v472 = vsub.f32 %v247, %v471
        %473 = vmatpush1.msra.mxu0 %v472
        %474 = vmatprep.subr.mxu0 0.0
        %v475 = vand.u32 %v246, 4294901760
        %v476 = vsub.f32 %v246, %v475
        %477 = vmatpush1.msra.mxu0 %v476
        %478 = vmatprep.subr.mxu0 0.0
        %v479 = vand.u32 %v245, 4294901760
        %v480 = vsub.f32 %v245, %v479
        %481 = vmatpush1.msra.mxu0 %v480
        %482 = vmatprep.subr.mxu0 0.0
        %483 = vmatpush2.msra.mxu0 0.0
        %484 = vmatprep.subr.mxu0 0.0
        %485 = vmatpush2.msra.mxu0 0.0
        %486 = vmatprep.subr.mxu0 0.0
        %487 = vmatpush2.msra.mxu0 0.0
        %488 = vmatprep.subr.mxu0 0.0
        %489 = vmatpush2.msra.mxu0 0.0
        %490 = vmatprep.subr.mxu0 0.0
        %491 = vmatpush2.msra.mxu0 0.0
        %492 = vmatprep.subr.mxu0 0.0
        %493 = vmatpush2.msra.mxu0 0.0
        %494 = vmatprep.subr.mxu0 0.0
        %495 = vmatpush2.msra.mxu0 0.0
        %496 = vmatprep.subr.mxu0 0.0
        %497 = vmatpush2.msra.mxu0 0.0
        %498 = vmatprep.subr.mxu0 0.0
        %499 = vmatpush2.msra.mxu0 0.0
        %500 = vmatprep.subr.mxu0 0.0
        %501 = vmatpush2.msra.mxu0 0.0
        %502 = vmatprep.subr.mxu0 0.0
        %503 = vmatpush2.msra.mxu0 0.0
        %504 = vmatprep.subr.mxu0 0.0
        %505 = vmatpush2.msra.mxu0 0.0
        %506 = vmatprep.subr.mxu0 0.0
        %507 = vmatpush2.msra.mxu0 0.0
        %508 = vmatprep.subr.mxu0 0.0
        %509 = vmatpush2.msra.mxu0 0.0
        %510 = vmatprep.subr.mxu0 0.0
        %511 = vmatpush2.msra.mxu0 0.0
        %512 = vmatprep.subr.mxu0 0.0
        %513 = vmatpush2.msra.mxu0 0.0
        %514 = vmatprep.mubr.f32.mxu0 0.0
        %v515 = vand.u32 %v251, 4294901760
        %v516 = vsub.f32 %v251, %v515
        %517 = vmatmul.mubr.f32.gmra.mxu0 %v516
        %v518 = vpop.f32.mrf.mxu0
        %v519 = vadd.f32 %v433, %v518
        %v520 = vpop.f32.mrf.mxu0
        %521 = vmatprep.mubr.f32.mxu0 0.0
        %v522 = vand.u32 %v254, 4294901760
        %v523 = vsub.f32 %v254, %v522
        %524 = vmatmul.mubr.f32.gmra.mxu0 %v523
        %v525 = vpop.f32.mrf.mxu0
        %v526 = vadd.f32 %v439, %v525
        %v527 = vpop.f32.mrf.mxu0
        %528 = vdwg.mxu0
        %529 = vmatprep.subr.mxu0 0.0
        %530 = vmatpush1.msra.mxu0 0.0
        %531 = vmatprep.subr.mxu0 0.0
        %532 = vmatpush1.msra.mxu0 0.0
        %533 = vmatprep.subr.mxu0 0.0
        %534 = vmatpush1.msra.mxu0 0.0
        %535 = vmatprep.subr.mxu0 0.0
        %536 = vmatpush1.msra.mxu0 0.0
        %537 = vmatprep.subr.mxu0 0.0
        %538 = vmatpush1.msra.mxu0 0.0
        %539 = vmatprep.subr.mxu0 0.0
        %540 = vmatpush1.msra.mxu0 0.0
        %541 = vmatprep.subr.mxu0 0.0
        %542 = vmatpush1.msra.mxu0 0.0
        %543 = vmatprep.subr.mxu0 0.0
        %544 = vmatpush1.msra.mxu0 0.0
        %545 = vmatprep.subr.mxu0 0.0
        %546 = vmatpush1.msra.mxu0 0.0
        %547 = vmatprep.subr.mxu0 0.0
        %548 = vmatpush1.msra.mxu0 0.0
        %549 = vmatprep.subr.mxu0 0.0
        %550 = vmatpush1.msra.mxu0 0.0
        %551 = vmatprep.subr.mxu0 0.0
        %552 = vmatpush1.msra.mxu0 0.0
        %553 = vmatprep.subr.mxu0 0.0
        %v554 = vand.u32 %v248, 4294901760
        %555 = vmatpush1.msra.mxu0 %v554
        %556 = vmatprep.subr.mxu0 0.0
        %v557 = vand.u32 %v247, 4294901760
        %558 = vmatpush1.msra.mxu0 %v557
        %559 = vmatprep.subr.mxu0 0.0
        %v560 = vand.u32 %v246, 4294901760
        %561 = vmatpush1.msra.mxu0 %v560
        %562 = vmatprep.subr.mxu0 0.0
        %v563 = vand.u32 %v245, 4294901760
        %564 = vmatpush1.msra.mxu0 %v563
        %565 = vmatprep.subr.mxu0 0.0
        %566 = vmatpush2.msra.mxu0 0.0
        %567 = vmatprep.subr.mxu0 0.0
        %568 = vmatpush2.msra.mxu0 0.0
        %569 = vmatprep.subr.mxu0 0.0
        %570 = vmatpush2.msra.mxu0 0.0
        %571 = vmatprep.subr.mxu0 0.0
        %572 = vmatpush2.msra.mxu0 0.0
        %573 = vmatprep.subr.mxu0 0.0
        %574 = vmatpush2.msra.mxu0 0.0
        %575 = vmatprep.subr.mxu0 0.0
        %576 = vmatpush2.msra.mxu0 0.0
        %577 = vmatprep.subr.mxu0 0.0
        %578 = vmatpush2.msra.mxu0 0.0
        %579 = vmatprep.subr.mxu0 0.0
        %580 = vmatpush2.msra.mxu0 0.0
        %581 = vmatprep.subr.mxu0 0.0
        %582 = vmatpush2.msra.mxu0 0.0
        %583 = vmatprep.subr.mxu0 0.0
        %584 = vmatpush2.msra.mxu0 0.0
        %585 = vmatprep.subr.mxu0 0.0
        %586 = vmatpush2.msra.mxu0 0.0
        %587 = vmatprep.subr.mxu0 0.0
        %588 = vmatpush2.msra.mxu0 0.0
        %589 = vmatprep.subr.mxu0 0.0
        %590 = vmatpush2.msra.mxu0 0.0
        %591 = vmatprep.subr.mxu0 0.0
        %592 = vmatpush2.msra.mxu0 0.0
        %593 = vmatprep.subr.mxu0 0.0
        %594 = vmatpush2.msra.mxu0 0.0
        %595 = vmatprep.subr.mxu0 0.0
        %596 = vmatpush2.msra.mxu0 0.0
        %597 = vmatprep.mubr.f32.mxu0 0.0
        %v598 = vand.u32 %v251, 4294901760
        %v599 = vsub.f32 %v251, %v598
        %v600 = vand.u32 %v599, 4294901760
        %601 = vmatmul.mubr.f32.gmra.mxu0 %v600
        %v602 = vpop.f32.mrf.mxu0
        %v603 = vadd.f32 %v519, %v602
        %v604 = vpop.f32.mrf.mxu0
        %605 = vmatprep.mubr.f32.mxu0 0.0
        %v606 = vand.u32 %v254, 4294901760
        %v607 = vsub.f32 %v254, %v606
        %v608 = vand.u32 %v607, 4294901760
        %609 = vmatmul.mubr.f32.gmra.mxu0 %v608
        %v610 = vpop.f32.mrf.mxu0
        %v611 = vadd.f32 %v526, %v610
        %v612 = vpop.f32.mrf.mxu0
        %613 = vdwg.mxu0
        %614 = vmatprep.subr.mxu0 0.0
        %615 = vmatpush1.msra.mxu0 0.0
        %616 = vmatprep.subr.mxu0 0.0
        %617 = vmatpush1.msra.mxu0 0.0
        %618 = vmatprep.subr.mxu0 0.0
        %619 = vmatpush1.msra.mxu0 0.0
        %620 = vmatprep.subr.mxu0 0.0
        %621 = vmatpush1.msra.mxu0 0.0
        %622 = vmatprep.subr.mxu0 0.0
        %623 = vmatpush1.msra.mxu0 0.0
        %624 = vmatprep.subr.mxu0 0.0
        %625 = vmatpush1.msra.mxu0 0.0
        %626 = vmatprep.subr.mxu0 0.0
        %627 = vmatpush1.msra.mxu0 0.0
        %628 = vmatprep.subr.mxu0 0.0
        %629 = vmatpush1.msra.mxu0 0.0
        %630 = vmatprep.subr.mxu0 0.0
        %631 = vmatpush1.msra.mxu0 0.0
        %632 = vmatprep.subr.mxu0 0.0
        %633 = vmatpush1.msra.mxu0 0.0
        %634 = vmatprep.subr.mxu0 0.0
        %635 = vmatpush1.msra.mxu0 0.0
        %636 = vmatprep.subr.mxu0 0.0
        %637 = vmatpush1.msra.mxu0 0.0
        %638 = vmatprep.subr.mxu0 0.0
        %v639 = vand.u32 %v248, 4294901760
        %v640 = vsub.f32 %v248, %v639
        %v641 = vand.u32 %v640, 4294901760
        %642 = vmatpush1.msra.mxu0 %v641
        %643 = vmatprep.subr.mxu0 0.0
        %v644 = vand.u32 %v247, 4294901760
        %v645 = vsub.f32 %v247, %v644
        %v646 = vand.u32 %v645, 4294901760
        %647 = vmatpush1.msra.mxu0 %v646
        %648 = vmatprep.subr.mxu0 0.0
        %v649 = vand.u32 %v246, 4294901760
        %v650 = vsub.f32 %v246, %v649
        %v651 = vand.u32 %v650, 4294901760
        %652 = vmatpush1.msra.mxu0 %v651
        %653 = vmatprep.subr.mxu0 0.0
        %v654 = vand.u32 %v245, 4294901760
        %v655 = vsub.f32 %v245, %v654
        %v656 = vand.u32 %v655, 4294901760
        %657 = vmatpush1.msra.mxu0 %v656
        %658 = vmatprep.subr.mxu0 0.0
        %659 = vmatpush2.msra.mxu0 0.0
        %660 = vmatprep.subr.mxu0 0.0
        %661 = vmatpush2.msra.mxu0 0.0
        %662 = vmatprep.subr.mxu0 0.0
        %663 = vmatpush2.msra.mxu0 0.0
        %664 = vmatprep.subr.mxu0 0.0
        %665 = vmatpush2.msra.mxu0 0.0
        %666 = vmatprep.subr.mxu0 0.0
        %667 = vmatpush2.msra.mxu0 0.0
        %668 = vmatprep.subr.mxu0 0.0
        %669 = vmatpush2.msra.mxu0 0.0
        %670 = vmatprep.subr.mxu0 0.0
        %671 = vmatpush2.msra.mxu0 0.0
        %672 = vmatprep.subr.mxu0 0.0
        %673 = vmatpush2.msra.mxu0 0.0
        %674 = vmatprep.subr.mxu0 0.0
        %675 = vmatpush2.msra.mxu0 0.0
        %676 = vmatprep.subr.mxu0 0.0
        %677 = vmatpush2.msra.mxu0 0.0
        %678 = vmatprep.subr.mxu0 0.0
        %679 = vmatpush2.msra.mxu0 0.0
        %680 = vmatprep.subr.mxu0 0.0
        %681 = vmatpush2.msra.mxu0 0.0
        %682 = vmatprep.subr.mxu0 0.0
        %683 = vmatpush2.msra.mxu0 0.0
        %684 = vmatprep.subr.mxu0 0.0
        %685 = vmatpush2.msra.mxu0 0.0
        %686 = vmatprep.subr.mxu0 0.0
        %687 = vmatpush2.msra.mxu0 0.0
        %688 = vmatprep.subr.mxu0 0.0
        %689 = vmatpush2.msra.mxu0 0.0
        %690 = vmatprep.mubr.f32.mxu0 0.0
        %v691 = vand.u32 %v251, 4294901760
        %692 = vmatmul.mubr.f32.gmra.mxu0 %v691
        %v693 = vpop.f32.mrf.mxu0
        %v694 = vadd.f32 %v603, %v693
        %v695 = vpop.f32.mrf.mxu0
        %696 = vmatprep.mubr.f32.mxu0 0.0
        %v697 = vand.u32 %v254, 4294901760
        %698 = vmatmul.mubr.f32.gmra.mxu0 %v697
        %v699 = vpop.f32.mrf.mxu0
        %v700 = vadd.f32 %v611, %v699
        %v701 = vpop.f32.mrf.mxu0
        %702 = vdwg.mxu0
        %703 = vmatprep.subr.mxu0 0.0
        %704 = vmatpush1.msra.mxu0 0.0
        %705 = vmatprep.subr.mxu0 0.0
        %706 = vmatpush1.msra.mxu0 0.0
        %707 = vmatprep.subr.mxu0 0.0
        %708 = vmatpush1.msra.mxu0 0.0
        %709 = vmatprep.subr.mxu0 0.0
        %710 = vmatpush1.msra.mxu0 0.0
        %711 = vmatprep.subr.mxu0 0.0
        %712 = vmatpush1.msra.mxu0 0.0
        %713 = vmatprep.subr.mxu0 0.0
        %714 = vmatpush1.msra.mxu0 0.0
        %715 = vmatprep.subr.mxu0 0.0
        %716 = vmatpush1.msra.mxu0 0.0
        %717 = vmatprep.subr.mxu0 0.0
        %718 = vmatpush1.msra.mxu0 0.0
        %719 = vmatprep.subr.mxu0 0.0
        %720 = vmatpush1.msra.mxu0 0.0
        %721 = vmatprep.subr.mxu0 0.0
        %722 = vmatpush1.msra.mxu0 0.0
        %723 = vmatprep.subr.mxu0 0.0
        %724 = vmatpush1.msra.mxu0 0.0
        %725 = vmatprep.subr.mxu0 0.0
        %726 = vmatpush1.msra.mxu0 0.0
        %727 = vmatprep.subr.mxu0 0.0
        %v728 = vand.u32 %v248, 4294901760
        %729 = vmatpush1.msra.mxu0 %v728
        %730 = vmatprep.subr.mxu0 0.0
        %v731 = vand.u32 %v247, 4294901760
        %732 = vmatpush1.msra.mxu0 %v731
        %733 = vmatprep.subr.mxu0 0.0
        %v734 = vand.u32 %v246, 4294901760
        %735 = vmatpush1.msra.mxu0 %v734
        %736 = vmatprep.subr.mxu0 0.0
        %v737 = vand.u32 %v245, 4294901760
        %738 = vmatpush1.msra.mxu0 %v737
        %739 = vmatprep.subr.mxu0 0.0
        %740 = vmatpush2.msra.mxu0 0.0
        %741 = vmatprep.subr.mxu0 0.0
        %742 = vmatpush2.msra.mxu0 0.0
        %743 = vmatprep.subr.mxu0 0.0
        %744 = vmatpush2.msra.mxu0 0.0
        %745 = vmatprep.subr.mxu0 0.0
        %746 = vmatpush2.msra.mxu0 0.0
        %747 = vmatprep.subr.mxu0 0.0
        %748 = vmatpush2.msra.mxu0 0.0
        %749 = vmatprep.subr.mxu0 0.0
        %750 = vmatpush2.msra.mxu0 0.0
        %751 = vmatprep.subr.mxu0 0.0
        %752 = vmatpush2.msra.mxu0 0.0
        %753 = vmatprep.subr.mxu0 0.0
        %754 = vmatpush2.msra.mxu0 0.0
        %755 = vmatprep.subr.mxu0 0.0
        %756 = vmatpush2.msra.mxu0 0.0
        %757 = vmatprep.subr.mxu0 0.0
        %758 = vmatpush2.msra.mxu0 0.0
        %759 = vmatprep.subr.mxu0 0.0
        %760 = vmatpush2.msra.mxu0 0.0
        %761 = vmatprep.subr.mxu0 0.0
        %762 = vmatpush2.msra.mxu0 0.0
        %763 = vmatprep.subr.mxu0 0.0
        %764 = vmatpush2.msra.mxu0 0.0
        %765 = vmatprep.subr.mxu0 0.0
        %766 = vmatpush2.msra.mxu0 0.0
        %767 = vmatprep.subr.mxu0 0.0
        %768 = vmatpush2.msra.mxu0 0.0
        %769 = vmatprep.subr.mxu0 0.0
        %770 = vmatpush2.msra.mxu0 0.0
        %771 = vmatprep.mubr.f32.mxu0 0.0
        %v772 = vand.u32 %v251, 4294901760
        %773 = vmatmul.mubr.f32.gmra.mxu0 %v772
        %v774 = vpop.f32.mrf.mxu0
        %v775 = vadd.f32 %v694, %v774
        %v776 = vpop.f32.mrf.mxu0
        %777 = vmatprep.mubr.f32.mxu0 0.0
        %v778 = vand.u32 %v254, 4294901760
        %779 = vmatmul.mubr.f32.gmra.mxu0 %v778
        %v780 = vpop.f32.mrf.mxu0
        %v781 = vadd.f32 %v700, %v780
        %v782 = vpop.f32.mrf.mxu0
        %783 = vdwg.mxu0
        %v784 = vld [vmem:[%s3] sm:$0xff]
        %v785 = vld [vmem:[%s3 + $0x8] sm:$0xff]
        %v786 = vld [vmem:[%s3 + $0x10] sm:$0xff]
        %vm787 = vcmask 130048
        %v789 = vsel %vm787, %v784, 0
        %v792 = vsel %vm787, %v785, 0
        %v795 = vsel %vm787, %v786, 0
        %797 = vmatprep.subr.mxu0 0.0
        %798 = vmatpush1.msra.mxu0 0.0
        %799 = vmatprep.subr.mxu0 0.0
        %800 = vmatpush1.msra.mxu0 0.0
        %801 = vmatprep.subr.mxu0 0.0
        %802 = vmatpush1.msra.mxu0 0.0
        %803 = vmatprep.subr.mxu0 0.0
        %804 = vmatpush1.msra.mxu0 0.0
        %805 = vmatprep.subr.mxu0 0.0
        %806 = vmatpush1.msra.mxu0 0.0
        %807 = vmatprep.subr.mxu0 0.0
        %808 = vmatpush1.msra.mxu0 0.0
        %809 = vmatprep.subr.mxu0 0.0
        %810 = vmatpush1.msra.mxu0 0.0
        %811 = vmatprep.subr.mxu0 0.0
        %812 = vmatpush1.msra.mxu0 0.0
        %813 = vmatprep.subr.mxu0 0.0
        %814 = vmatpush1.msra.mxu0 0.0
        %815 = vmatprep.subr.mxu0 0.0
        %816 = vmatpush1.msra.mxu0 0.0
        %817 = vmatprep.subr.mxu0 0.0
        %818 = vmatpush1.msra.mxu0 0.0
        %819 = vmatprep.subr.mxu0 0.0
        %820 = vmatpush1.msra.mxu0 0.0
        %821 = vmatprep.subr.mxu0 0.0
        %822 = vmatpush1.msra.mxu0 0.0
        %823 = vmatprep.subr.mxu0 0.0
        %824 = vmatpush1.msra.mxu0 0.0
        %825 = vmatprep.subr.mxu0 0.0
        %v826 = vand.u32 %v781, 4294901760
        %827 = vmatpush1.msra.mxu0 %v826
        %828 = vmatprep.subr.mxu0 0.0
        %v829 = vand.u32 %v775, 4294901760
        %830 = vmatpush1.msra.mxu0 %v829
        %831 = vmatprep.subr.mxu0 0.0
        %832 = vmatpush2.msra.mxu0 0.0
        %833 = vmatprep.subr.mxu0 0.0
        %834 = vmatpush2.msra.mxu0 0.0
        %835 = vmatprep.subr.mxu0 0.0
        %836 = vmatpush2.msra.mxu0 0.0
        %837 = vmatprep.subr.mxu0 0.0
        %838 = vmatpush2.msra.mxu0 0.0
        %839 = vmatprep.subr.mxu0 0.0
        %840 = vmatpush2.msra.mxu0 0.0
        %841 = vmatprep.subr.mxu0 0.0
        %842 = vmatpush2.msra.mxu0 0.0
        %843 = vmatprep.subr.mxu0 0.0
        %844 = vmatpush2.msra.mxu0 0.0
        %845 = vmatprep.subr.mxu0 0.0
        %846 = vmatpush2.msra.mxu0 0.0
        %847 = vmatprep.subr.mxu0 0.0
        %848 = vmatpush2.msra.mxu0 0.0
        %849 = vmatprep.subr.mxu0 0.0
        %850 = vmatpush2.msra.mxu0 0.0
        %851 = vmatprep.subr.mxu0 0.0
        %852 = vmatpush2.msra.mxu0 0.0
        %853 = vmatprep.subr.mxu0 0.0
        %854 = vmatpush2.msra.mxu0 0.0
        %855 = vmatprep.subr.mxu0 0.0
        %856 = vmatpush2.msra.mxu0 0.0
        %857 = vmatprep.subr.mxu0 0.0
        %858 = vmatpush2.msra.mxu0 0.0
        %859 = vmatprep.subr.mxu0 0.0
        %860 = vmatpush2.msra.mxu0 0.0
        %861 = vmatprep.subr.mxu0 0.0
        %862 = vmatpush2.msra.mxu0 0.0
        %863 = vmatprep.mubr.f32.mxu0 0.0
        %v864 = vand.u32 %v789, 4294901760
        %v865 = vsub.f32 %v789, %v864
        %v866 = vand.u32 %v865, 4294901760
        %v867 = vsub.f32 %v865, %v866
        %v868 = vand.u32 %v867, 4294901760
        %869 = vmatmul.mubr.f32.gmra.mxu0 %v868
        %v870 = vpop.f32.mrf.mxu0
        %v871 = vadd.f32 0.0, %v870
        %v872 = vpop.f32.mrf.mxu0
        %873 = vmatprep.mubr.f32.mxu0 0.0
        %v874 = vand.u32 %v792, 4294901760
        %v875 = vsub.f32 %v792, %v874
        %v876 = vand.u32 %v875, 4294901760
        %v877 = vsub.f32 %v875, %v876
        %v878 = vand.u32 %v877, 4294901760
        %879 = vmatmul.mubr.f32.gmra.mxu0 %v878
        %v880 = vpop.f32.mrf.mxu0
        %v881 = vadd.f32 0.0, %v880
        %v882 = vpop.f32.mrf.mxu0
        %883 = vmatprep.mubr.f32.mxu0 0.0
        %v884 = vand.u32 %v795, 4294901760
        %v885 = vsub.f32 %v795, %v884
        %v886 = vand.u32 %v885, 4294901760
        %v887 = vsub.f32 %v885, %v886
        %v888 = vand.u32 %v887, 4294901760
        %889 = vmatmul.mubr.f32.gmra.mxu0 %v888
        %v890 = vpop.f32.mrf.mxu0
        %v891 = vadd.f32 0.0, %v890
        %v892 = vpop.f32.mrf.mxu0
        %893 = vdwg.mxu0
        %894 = vmatprep.subr.mxu0 0.0
        %895 = vmatpush1.msra.mxu0 0.0
        %896 = vmatprep.subr.mxu0 0.0
        %897 = vmatpush1.msra.mxu0 0.0
        %898 = vmatprep.subr.mxu0 0.0
        %899 = vmatpush1.msra.mxu0 0.0
        %900 = vmatprep.subr.mxu0 0.0
        %901 = vmatpush1.msra.mxu0 0.0
        %902 = vmatprep.subr.mxu0 0.0
        %903 = vmatpush1.msra.mxu0 0.0
        %904 = vmatprep.subr.mxu0 0.0
        %905 = vmatpush1.msra.mxu0 0.0
        %906 = vmatprep.subr.mxu0 0.0
        %907 = vmatpush1.msra.mxu0 0.0
        %908 = vmatprep.subr.mxu0 0.0
        %909 = vmatpush1.msra.mxu0 0.0
        %910 = vmatprep.subr.mxu0 0.0
        %911 = vmatpush1.msra.mxu0 0.0
        %912 = vmatprep.subr.mxu0 0.0
        %913 = vmatpush1.msra.mxu0 0.0
        %914 = vmatprep.subr.mxu0 0.0
        %915 = vmatpush1.msra.mxu0 0.0
        %916 = vmatprep.subr.mxu0 0.0
        %917 = vmatpush1.msra.mxu0 0.0
        %918 = vmatprep.subr.mxu0 0.0
        %919 = vmatpush1.msra.mxu0 0.0
        %920 = vmatprep.subr.mxu0 0.0
        %921 = vmatpush1.msra.mxu0 0.0
        %922 = vmatprep.subr.mxu0 0.0
        %v923 = vand.u32 %v781, 4294901760
        %v924 = vsub.f32 %v781, %v923
        %v925 = vand.u32 %v924, 4294901760
        %v926 = vsub.f32 %v924, %v925
        %v927 = vand.u32 %v926, 4294901760
        %928 = vmatpush1.msra.mxu0 %v927
        %929 = vmatprep.subr.mxu0 0.0
        %v930 = vand.u32 %v775, 4294901760
        %v931 = vsub.f32 %v775, %v930
        %v932 = vand.u32 %v931, 4294901760
        %v933 = vsub.f32 %v931, %v932
        %v934 = vand.u32 %v933, 4294901760
        %935 = vmatpush1.msra.mxu0 %v934
        %936 = vmatprep.subr.mxu0 0.0
        %937 = vmatpush2.msra.mxu0 0.0
        %938 = vmatprep.subr.mxu0 0.0
        %939 = vmatpush2.msra.mxu0 0.0
        %940 = vmatprep.subr.mxu0 0.0
        %941 = vmatpush2.msra.mxu0 0.0
        %942 = vmatprep.subr.mxu0 0.0
        %943 = vmatpush2.msra.mxu0 0.0
        %944 = vmatprep.subr.mxu0 0.0
        %945 = vmatpush2.msra.mxu0 0.0
        %946 = vmatprep.subr.mxu0 0.0
        %947 = vmatpush2.msra.mxu0 0.0
        %948 = vmatprep.subr.mxu0 0.0
        %949 = vmatpush2.msra.mxu0 0.0
        %950 = vmatprep.subr.mxu0 0.0
        %951 = vmatpush2.msra.mxu0 0.0
        %952 = vmatprep.subr.mxu0 0.0
        %953 = vmatpush2.msra.mxu0 0.0
        %954 = vmatprep.subr.mxu0 0.0
        %955 = vmatpush2.msra.mxu0 0.0
        %956 = vmatprep.subr.mxu0 0.0
        %957 = vmatpush2.msra.mxu0 0.0
        %958 = vmatprep.subr.mxu0 0.0
        %959 = vmatpush2.msra.mxu0 0.0
        %960 = vmatprep.subr.mxu0 0.0
        %961 = vmatpush2.msra.mxu0 0.0
        %962 = vmatprep.subr.mxu0 0.0
        %963 = vmatpush2.msra.mxu0 0.0
        %964 = vmatprep.subr.mxu0 0.0
        %965 = vmatpush2.msra.mxu0 0.0
        %966 = vmatprep.subr.mxu0 0.0
        %967 = vmatpush2.msra.mxu0 0.0
        %968 = vmatprep.mubr.f32.mxu0 0.0
        %v969 = vand.u32 %v789, 4294901760
        %970 = vmatmul.mubr.f32.gmra.mxu0 %v969
        %v971 = vpop.f32.mrf.mxu0
        %v972 = vadd.f32 %v871, %v971
        %v973 = vpop.f32.mrf.mxu0
        %974 = vmatprep.mubr.f32.mxu0 0.0
        %v975 = vand.u32 %v792, 4294901760
        %976 = vmatmul.mubr.f32.gmra.mxu0 %v975
        %v977 = vpop.f32.mrf.mxu0
        %v978 = vadd.f32 %v881, %v977
        %v979 = vpop.f32.mrf.mxu0
        %980 = vmatprep.mubr.f32.mxu0 0.0
        %v981 = vand.u32 %v795, 4294901760
        %982 = vmatmul.mubr.f32.gmra.mxu0 %v981
        %v983 = vpop.f32.mrf.mxu0
        %v984 = vadd.f32 %v891, %v983
        %v985 = vpop.f32.mrf.mxu0
        %986 = vdwg.mxu0
        %987 = vmatprep.subr.mxu0 0.0
        %988 = vmatpush1.msra.mxu0 0.0
        %989 = vmatprep.subr.mxu0 0.0
        %990 = vmatpush1.msra.mxu0 0.0
        %991 = vmatprep.subr.mxu0 0.0
        %992 = vmatpush1.msra.mxu0 0.0
        %993 = vmatprep.subr.mxu0 0.0
        %994 = vmatpush1.msra.mxu0 0.0
        %995 = vmatprep.subr.mxu0 0.0
        %996 = vmatpush1.msra.mxu0 0.0
        %997 = vmatprep.subr.mxu0 0.0
        %998 = vmatpush1.msra.mxu0 0.0
        %999 = vmatprep.subr.mxu0 0.0
        %1000 = vmatpush1.msra.mxu0 0.0
        %1001 = vmatprep.subr.mxu0 0.0
        %1002 = vmatpush1.msra.mxu0 0.0
        %1003 = vmatprep.subr.mxu0 0.0
        %1004 = vmatpush1.msra.mxu0 0.0
        %1005 = vmatprep.subr.mxu0 0.0
        %1006 = vmatpush1.msra.mxu0 0.0
        %1007 = vmatprep.subr.mxu0 0.0
        %1008 = vmatpush1.msra.mxu0 0.0
        %1009 = vmatprep.subr.mxu0 0.0
        %1010 = vmatpush1.msra.mxu0 0.0
        %1011 = vmatprep.subr.mxu0 0.0
        %1012 = vmatpush1.msra.mxu0 0.0
        %1013 = vmatprep.subr.mxu0 0.0
        %1014 = vmatpush1.msra.mxu0 0.0
        %1015 = vmatprep.subr.mxu0 0.0
        %v1016 = vand.u32 %v781, 4294901760
        %v1017 = vsub.f32 %v781, %v1016
        %1018 = vmatpush1.msra.mxu0 %v1017
        %1019 = vmatprep.subr.mxu0 0.0
        %v1020 = vand.u32 %v775, 4294901760
        %v1021 = vsub.f32 %v775, %v1020
        %1022 = vmatpush1.msra.mxu0 %v1021
        %1023 = vmatprep.subr.mxu0 0.0
        %1024 = vmatpush2.msra.mxu0 0.0
        %1025 = vmatprep.subr.mxu0 0.0
        %1026 = vmatpush2.msra.mxu0 0.0
        %1027 = vmatprep.subr.mxu0 0.0
        %1028 = vmatpush2.msra.mxu0 0.0
        %1029 = vmatprep.subr.mxu0 0.0
        %1030 = vmatpush2.msra.mxu0 0.0
        %1031 = vmatprep.subr.mxu0 0.0
        %1032 = vmatpush2.msra.mxu0 0.0
        %1033 = vmatprep.subr.mxu0 0.0
        %1034 = vmatpush2.msra.mxu0 0.0
        %1035 = vmatprep.subr.mxu0 0.0
        %1036 = vmatpush2.msra.mxu0 0.0
        %1037 = vmatprep.subr.mxu0 0.0
        %1038 = vmatpush2.msra.mxu0 0.0
        %1039 = vmatprep.subr.mxu0 0.0
        %1040 = vmatpush2.msra.mxu0 0.0
        %1041 = vmatprep.subr.mxu0 0.0
        %1042 = vmatpush2.msra.mxu0 0.0
        %1043 = vmatprep.subr.mxu0 0.0
        %1044 = vmatpush2.msra.mxu0 0.0
        %1045 = vmatprep.subr.mxu0 0.0
        %1046 = vmatpush2.msra.mxu0 0.0
        %1047 = vmatprep.subr.mxu0 0.0
        %1048 = vmatpush2.msra.mxu0 0.0
        %1049 = vmatprep.subr.mxu0 0.0
        %1050 = vmatpush2.msra.mxu0 0.0
        %1051 = vmatprep.subr.mxu0 0.0
        %1052 = vmatpush2.msra.mxu0 0.0
        %1053 = vmatprep.subr.mxu0 0.0
        %1054 = vmatpush2.msra.mxu0 0.0
        %1055 = vmatprep.mubr.f32.mxu0 0.0
        %v1056 = vand.u32 %v789, 4294901760
        %v1057 = vsub.f32 %v789, %v1056
        %1058 = vmatmul.mubr.f32.gmra.mxu0 %v1057
        %v1059 = vpop.f32.mrf.mxu0
        %v1060 = vadd.f32 %v972, %v1059
        %v1061 = vpop.f32.mrf.mxu0
        %1062 = vmatprep.mubr.f32.mxu0 0.0
        %v1063 = vand.u32 %v792, 4294901760
        %v1064 = vsub.f32 %v792, %v1063
        %1065 = vmatmul.mubr.f32.gmra.mxu0 %v1064
        %v1066 = vpop.f32.mrf.mxu0
        %v1067 = vadd.f32 %v978, %v1066
        %v1068 = vpop.f32.mrf.mxu0
        %1069 = vmatprep.mubr.f32.mxu0 0.0
        %v1070 = vand.u32 %v795, 4294901760
        %v1071 = vsub.f32 %v795, %v1070
        %1072 = vmatmul.mubr.f32.gmra.mxu0 %v1071
        %v1073 = vpop.f32.mrf.mxu0
        %v1074 = vadd.f32 %v984, %v1073
        %v1075 = vpop.f32.mrf.mxu0
        %1076 = vdwg.mxu0
        %1077 = vmatprep.subr.mxu0 0.0
        %1078 = vmatpush1.msra.mxu0 0.0
        %1079 = vmatprep.subr.mxu0 0.0
        %1080 = vmatpush1.msra.mxu0 0.0
        %1081 = vmatprep.subr.mxu0 0.0
        %1082 = vmatpush1.msra.mxu0 0.0
        %1083 = vmatprep.subr.mxu0 0.0
        %1084 = vmatpush1.msra.mxu0 0.0
        %1085 = vmatprep.subr.mxu0 0.0
        %1086 = vmatpush1.msra.mxu0 0.0
        %1087 = vmatprep.subr.mxu0 0.0
        %1088 = vmatpush1.msra.mxu0 0.0
        %1089 = vmatprep.subr.mxu0 0.0
        %1090 = vmatpush1.msra.mxu0 0.0
        %1091 = vmatprep.subr.mxu0 0.0
        %1092 = vmatpush1.msra.mxu0 0.0
        %1093 = vmatprep.subr.mxu0 0.0
        %1094 = vmatpush1.msra.mxu0 0.0
        %1095 = vmatprep.subr.mxu0 0.0
        %1096 = vmatpush1.msra.mxu0 0.0
        %1097 = vmatprep.subr.mxu0 0.0
        %1098 = vmatpush1.msra.mxu0 0.0
        %1099 = vmatprep.subr.mxu0 0.0
        %1100 = vmatpush1.msra.mxu0 0.0
        %1101 = vmatprep.subr.mxu0 0.0
        %1102 = vmatpush1.msra.mxu0 0.0
        %1103 = vmatprep.subr.mxu0 0.0
        %1104 = vmatpush1.msra.mxu0 0.0
        %1105 = vmatprep.subr.mxu0 0.0
        %v1106 = vand.u32 %v781, 4294901760
        %1107 = vmatpush1.msra.mxu0 %v1106
        %1108 = vmatprep.subr.mxu0 0.0
        %v1109 = vand.u32 %v775, 4294901760
        %1110 = vmatpush1.msra.mxu0 %v1109
        %1111 = vmatprep.subr.mxu0 0.0
        %1112 = vmatpush2.msra.mxu0 0.0
        %1113 = vmatprep.subr.mxu0 0.0
        %1114 = vmatpush2.msra.mxu0 0.0
        %1115 = vmatprep.subr.mxu0 0.0
        %1116 = vmatpush2.msra.mxu0 0.0
        %1117 = vmatprep.subr.mxu0 0.0
        %1118 = vmatpush2.msra.mxu0 0.0
        %1119 = vmatprep.subr.mxu0 0.0
        %1120 = vmatpush2.msra.mxu0 0.0
        %1121 = vmatprep.subr.mxu0 0.0
        %1122 = vmatpush2.msra.mxu0 0.0
        %1123 = vmatprep.subr.mxu0 0.0
        %1124 = vmatpush2.msra.mxu0 0.0
        %1125 = vmatprep.subr.mxu0 0.0
        %1126 = vmatpush2.msra.mxu0 0.0
        %1127 = vmatprep.subr.mxu0 0.0
        %1128 = vmatpush2.msra.mxu0 0.0
        %1129 = vmatprep.subr.mxu0 0.0
        %1130 = vmatpush2.msra.mxu0 0.0
        %1131 = vmatprep.subr.mxu0 0.0
        %1132 = vmatpush2.msra.mxu0 0.0
        %1133 = vmatprep.subr.mxu0 0.0
        %1134 = vmatpush2.msra.mxu0 0.0
        %1135 = vmatprep.subr.mxu0 0.0
        %1136 = vmatpush2.msra.mxu0 0.0
        %1137 = vmatprep.subr.mxu0 0.0
        %1138 = vmatpush2.msra.mxu0 0.0
        %1139 = vmatprep.subr.mxu0 0.0
        %1140 = vmatpush2.msra.mxu0 0.0
        %1141 = vmatprep.subr.mxu0 0.0
        %1142 = vmatpush2.msra.mxu0 0.0
        %1143 = vmatprep.mubr.f32.mxu0 0.0
        %v1144 = vand.u32 %v789, 4294901760
        %v1145 = vsub.f32 %v789, %v1144
        %v1146 = vand.u32 %v1145, 4294901760
        %1147 = vmatmul.mubr.f32.gmra.mxu0 %v1146
        %v1148 = vpop.f32.mrf.mxu0
        %v1149 = vadd.f32 %v1060, %v1148
        %v1150 = vpop.f32.mrf.mxu0
        %1151 = vmatprep.mubr.f32.mxu0 0.0
        %v1152 = vand.u32 %v792, 4294901760
        %v1153 = vsub.f32 %v792, %v1152
        %v1154 = vand.u32 %v1153, 4294901760
        %1155 = vmatmul.mubr.f32.gmra.mxu0 %v1154
        %v1156 = vpop.f32.mrf.mxu0
        %v1157 = vadd.f32 %v1067, %v1156
        %v1158 = vpop.f32.mrf.mxu0
        %1159 = vmatprep.mubr.f32.mxu0 0.0
        %v1160 = vand.u32 %v795, 4294901760
        %v1161 = vsub.f32 %v795, %v1160
        %v1162 = vand.u32 %v1161, 4294901760
        %1163 = vmatmul.mubr.f32.gmra.mxu0 %v1162
        %v1164 = vpop.f32.mrf.mxu0
        %v1165 = vadd.f32 %v1074, %v1164
        %v1166 = vpop.f32.mrf.mxu0
        %1167 = vdwg.mxu0
        %1168 = vmatprep.subr.mxu0 0.0
        %1169 = vmatpush1.msra.mxu0 0.0
        %1170 = vmatprep.subr.mxu0 0.0
        %1171 = vmatpush1.msra.mxu0 0.0
        %1172 = vmatprep.subr.mxu0 0.0
        %1173 = vmatpush1.msra.mxu0 0.0
        %1174 = vmatprep.subr.mxu0 0.0
        %1175 = vmatpush1.msra.mxu0 0.0
        %1176 = vmatprep.subr.mxu0 0.0
        %1177 = vmatpush1.msra.mxu0 0.0
        %1178 = vmatprep.subr.mxu0 0.0
        %1179 = vmatpush1.msra.mxu0 0.0
        %1180 = vmatprep.subr.mxu0 0.0
        %1181 = vmatpush1.msra.mxu0 0.0
        %1182 = vmatprep.subr.mxu0 0.0
        %1183 = vmatpush1.msra.mxu0 0.0
        %1184 = vmatprep.subr.mxu0 0.0
        %1185 = vmatpush1.msra.mxu0 0.0
        %1186 = vmatprep.subr.mxu0 0.0
        %1187 = vmatpush1.msra.mxu0 0.0
        %1188 = vmatprep.subr.mxu0 0.0
        %1189 = vmatpush1.msra.mxu0 0.0
        %1190 = vmatprep.subr.mxu0 0.0
        %1191 = vmatpush1.msra.mxu0 0.0
        %1192 = vmatprep.subr.mxu0 0.0
        %1193 = vmatpush1.msra.mxu0 0.0
        %1194 = vmatprep.subr.mxu0 0.0
        %1195 = vmatpush1.msra.mxu0 0.0
        %1196 = vmatprep.subr.mxu0 0.0
        %v1197 = vand.u32 %v781, 4294901760
        %v1198 = vsub.f32 %v781, %v1197
        %v1199 = vand.u32 %v1198, 4294901760
        %1200 = vmatpush1.msra.mxu0 %v1199
        %1201 = vmatprep.subr.mxu0 0.0
        %v1202 = vand.u32 %v775, 4294901760
        %v1203 = vsub.f32 %v775, %v1202
        %v1204 = vand.u32 %v1203, 4294901760
        %1205 = vmatpush1.msra.mxu0 %v1204
        %1206 = vmatprep.subr.mxu0 0.0
        %1207 = vmatpush2.msra.mxu0 0.0
        %1208 = vmatprep.subr.mxu0 0.0
        %1209 = vmatpush2.msra.mxu0 0.0
        %1210 = vmatprep.subr.mxu0 0.0
        %1211 = vmatpush2.msra.mxu0 0.0
        %1212 = vmatprep.subr.mxu0 0.0
        %1213 = vmatpush2.msra.mxu0 0.0
        %1214 = vmatprep.subr.mxu0 0.0
        %1215 = vmatpush2.msra.mxu0 0.0
        %1216 = vmatprep.subr.mxu0 0.0
        %1217 = vmatpush2.msra.mxu0 0.0
        %1218 = vmatprep.subr.mxu0 0.0
        %1219 = vmatpush2.msra.mxu0 0.0
        %1220 = vmatprep.subr.mxu0 0.0
        %1221 = vmatpush2.msra.mxu0 0.0
        %1222 = vmatprep.subr.mxu0 0.0
        %1223 = vmatpush2.msra.mxu0 0.0
        %1224 = vmatprep.subr.mxu0 0.0
        %1225 = vmatpush2.msra.mxu0 0.0
        %1226 = vmatprep.subr.mxu0 0.0
        %1227 = vmatpush2.msra.mxu0 0.0
        %1228 = vmatprep.subr.mxu0 0.0
        %1229 = vmatpush2.msra.mxu0 0.0
        %1230 = vmatprep.subr.mxu0 0.0
        %1231 = vmatpush2.msra.mxu0 0.0
        %1232 = vmatprep.subr.mxu0 0.0
        %1233 = vmatpush2.msra.mxu0 0.0
        %1234 = vmatprep.subr.mxu0 0.0
        %1235 = vmatpush2.msra.mxu0 0.0
        %1236 = vmatprep.subr.mxu0 0.0
        %1237 = vmatpush2.msra.mxu0 0.0
        %1238 = vmatprep.mubr.f32.mxu0 0.0
        %v1239 = vand.u32 %v789, 4294901760
        %1240 = vmatmul.mubr.f32.gmra.mxu0 %v1239
        %v1241 = vpop.f32.mrf.mxu0
        %v1242 = vadd.f32 %v1149, %v1241
        %v1243 = vpop.f32.mrf.mxu0
        %1244 = vmatprep.mubr.f32.mxu0 0.0
        %v1245 = vand.u32 %v792, 4294901760
        %1246 = vmatmul.mubr.f32.gmra.mxu0 %v1245
        %v1247 = vpop.f32.mrf.mxu0
        %v1248 = vadd.f32 %v1157, %v1247
        %v1249 = vpop.f32.mrf.mxu0
        %1250 = vmatprep.mubr.f32.mxu0 0.0
        %v1251 = vand.u32 %v795, 4294901760
        %1252 = vmatmul.mubr.f32.gmra.mxu0 %v1251
        %v1253 = vpop.f32.mrf.mxu0
        %v1254 = vadd.f32 %v1165, %v1253
        %v1255 = vpop.f32.mrf.mxu0
        %1256 = vdwg.mxu0
        %1257 = vmatprep.subr.mxu0 0.0
        %1258 = vmatpush1.msra.mxu0 0.0
        %1259 = vmatprep.subr.mxu0 0.0
        %1260 = vmatpush1.msra.mxu0 0.0
        %1261 = vmatprep.subr.mxu0 0.0
        %1262 = vmatpush1.msra.mxu0 0.0
        %1263 = vmatprep.subr.mxu0 0.0
        %1264 = vmatpush1.msra.mxu0 0.0
        %1265 = vmatprep.subr.mxu0 0.0
        %1266 = vmatpush1.msra.mxu0 0.0
        %1267 = vmatprep.subr.mxu0 0.0
        %1268 = vmatpush1.msra.mxu0 0.0
        %1269 = vmatprep.subr.mxu0 0.0
        %1270 = vmatpush1.msra.mxu0 0.0
        %1271 = vmatprep.subr.mxu0 0.0
        %1272 = vmatpush1.msra.mxu0 0.0
        %1273 = vmatprep.subr.mxu0 0.0
        %1274 = vmatpush1.msra.mxu0 0.0
        %1275 = vmatprep.subr.mxu0 0.0
        %1276 = vmatpush1.msra.mxu0 0.0
        %1277 = vmatprep.subr.mxu0 0.0
        %1278 = vmatpush1.msra.mxu0 0.0
        %1279 = vmatprep.subr.mxu0 0.0
        %1280 = vmatpush1.msra.mxu0 0.0
        %1281 = vmatprep.subr.mxu0 0.0
        %1282 = vmatpush1.msra.mxu0 0.0
        %1283 = vmatprep.subr.mxu0 0.0
        %1284 = vmatpush1.msra.mxu0 0.0
        %1285 = vmatprep.subr.mxu0 0.0
        %v1286 = vand.u32 %v781, 4294901760
        %1287 = vmatpush1.msra.mxu0 %v1286
        %1288 = vmatprep.subr.mxu0 0.0
        %v1289 = vand.u32 %v775, 4294901760
        %1290 = vmatpush1.msra.mxu0 %v1289
        %1291 = vmatprep.subr.mxu0 0.0
        %1292 = vmatpush2.msra.mxu0 0.0
        %1293 = vmatprep.subr.mxu0 0.0
        %1294 = vmatpush2.msra.mxu0 0.0
        %1295 = vmatprep.subr.mxu0 0.0
        %1296 = vmatpush2.msra.mxu0 0.0
        %1297 = vmatprep.subr.mxu0 0.0
        %1298 = vmatpush2.msra.mxu0 0.0
        %1299 = vmatprep.subr.mxu0 0.0
        %1300 = vmatpush2.msra.mxu0 0.0
        %1301 = vmatprep.subr.mxu0 0.0
        %1302 = vmatpush2.msra.mxu0 0.0
        %1303 = vmatprep.subr.mxu0 0.0
        %1304 = vmatpush2.msra.mxu0 0.0
        %1305 = vmatprep.subr.mxu0 0.0
        %1306 = vmatpush2.msra.mxu0 0.0
        %1307 = vmatprep.subr.mxu0 0.0
        %1308 = vmatpush2.msra.mxu0 0.0
        %1309 = vmatprep.subr.mxu0 0.0
        %1310 = vmatpush2.msra.mxu0 0.0
        %1311 = vmatprep.subr.mxu0 0.0
        %1312 = vmatpush2.msra.mxu0 0.0
        %1313 = vmatprep.subr.mxu0 0.0
        %1314 = vmatpush2.msra.mxu0 0.0
        %1315 = vmatprep.subr.mxu0 0.0
        %1316 = vmatpush2.msra.mxu0 0.0
        %1317 = vmatprep.subr.mxu0 0.0
        %1318 = vmatpush2.msra.mxu0 0.0
        %1319 = vmatprep.subr.mxu0 0.0
        %1320 = vmatpush2.msra.mxu0 0.0
        %1321 = vmatprep.subr.mxu0 0.0
        %1322 = vmatpush2.msra.mxu0 0.0
        %1323 = vmatprep.mubr.f32.mxu0 0.0
        %v1324 = vand.u32 %v789, 4294901760
        %1325 = vmatmul.mubr.f32.gmra.mxu0 %v1324
        %v1326 = vpop.f32.mrf.mxu0
        %v1327 = vadd.f32 %v1242, %v1326
        %v1328 = vpop.f32.mrf.mxu0
        %1329 = vmatprep.mubr.f32.mxu0 0.0
        %v1330 = vand.u32 %v792, 4294901760
        %1331 = vmatmul.mubr.f32.gmra.mxu0 %v1330
        %v1332 = vpop.f32.mrf.mxu0
        %v1333 = vadd.f32 %v1248, %v1332
        %v1334 = vpop.f32.mrf.mxu0
        %1335 = vmatprep.mubr.f32.mxu0 0.0
        %v1336 = vand.u32 %v795, 4294901760
        %1337 = vmatmul.mubr.f32.gmra.mxu0 %v1336
        %v1338 = vpop.f32.mrf.mxu0
        %v1339 = vadd.f32 %v1254, %v1338
        %v1340 = vpop.f32.mrf.mxu0
        %1341 = vdwg.mxu0
        %vm1342 = vcmp.gt.f32.partialorder %v1327, 0.0
        %vm1343 = vcmp.gt.f32.partialorder %v1333, 0.0
        %vm1344 = vcmp.gt.f32.partialorder %v1339, 0.0
        %v1345 = vmul.f32 %v1327, 0.2
        %v1346 = vmul.f32 %v1333, 0.2
        %v1347 = vmul.f32 %v1339, 0.2
        %v1348 = vsel %vm1342, %v1327, %v1345
        %v1349 = vsel %vm1343, %v1333, %v1346
        %v1350 = vsel %vm1344, %v1339, %v1347
        %v1351 = vmin.f32 %v1348, 60.0
        %v1352 = vmin.f32 %v1349, 60.0
        %v1353 = vmin.f32 %v1350, 60.0
        %v1354 = vmul.f32 %v1351, 1.442695
        %v1355 = vpow.pop %v1354
        %v1356 = vmul.f32 %v1352, 1.442695
        %v1357 = vpow.pop %v1356
        %v1358 = vmul.f32 %v1353, 1.442695
        %v1359 = vpow.pop %v1358
        %1360 = vst.msk [vmem:[#allocation2] sm:$0xff] %vm249, %v1355
        %1361 = vst.msk [vmem:[#allocation2 + $0x8] sm:$0xff] %vm249, %v1357
        %1362 = vst.msk [vmem:[#allocation2 + $0x10] sm:$0xff] %vm249, %v1359
        %1366 = vrot.lane.b32.xlu0 %v1327, 96
        %v1367 = vpop.permute.xlu0 %1366
        %1368 = vrot.lane.b32.xlu0 %v1333, 96
        %v1369 = vpop.permute.xlu0 %1368
        %1370 = vrot.lane.b32.xlu0 %v1339, 96
        %v1371 = vpop.permute.xlu0 %1370
        %v1375 = vmul.f32 %v1355, %v1367
        %v1376 = vmul.f32 %v1357, %v1369
        %v1377 = vmul.f32 %v1359, %v1371
        %1381 = vrot.lane.b32.xlu0 %v1375, 32
        %v1382 = vpop.permute.xlu0 %1381
        %1383 = vrot.lane.b32.xlu0 %v1376, 32
        %v1384 = vpop.permute.xlu0 %1383
        %1385 = vrot.lane.b32.xlu0 %v1377, 32
        %v1386 = vpop.permute.xlu0 %1385
        %vm1390 = vcmask 523520
        %1391 = vst.msk [vmem:[#allocation2] sm:$0xff] %vm1390, %v1382
        %1392 = vst.msk [vmem:[#allocation2 + $0x8] sm:$0xff] %vm1390, %v1384
        %1393 = vst.msk [vmem:[#allocation2 + $0x10] sm:$0xff] %vm1390, %v1386
        %v1394 = vld [vmem:[%s4] sm:$0xff]
        %v1395 = vld [vmem:[#allocation2] sm:$0xff]
        %v1396 = vld [vmem:[#allocation2 + $0x8] sm:$0xff]
        %v1397 = vld [vmem:[#allocation2 + $0x10] sm:$0xff]
        %vm1398 = vcmask 195584
        %v1400 = vsel %vm1398, %v1394, 0
        %1402 = vmatprep.subr.mxu0 0.0
        %1403 = vmatpush1.msra.mxu0 0.0
        %1404 = vmatprep.subr.mxu0 0.0
        %1405 = vmatpush1.msra.mxu0 0.0
        %1406 = vmatprep.subr.mxu0 0.0
        %1407 = vmatpush1.msra.mxu0 0.0
        %1408 = vmatprep.subr.mxu0 0.0
        %1409 = vmatpush1.msra.mxu0 0.0
        %1410 = vmatprep.subr.mxu0 0.0
        %1411 = vmatpush1.msra.mxu0 0.0
        %1412 = vmatprep.subr.mxu0 0.0
        %1413 = vmatpush1.msra.mxu0 0.0
        %1414 = vmatprep.subr.mxu0 0.0
        %1415 = vmatpush1.msra.mxu0 0.0
        %1416 = vmatprep.subr.mxu0 0.0
        %1417 = vmatpush1.msra.mxu0 0.0
        %1418 = vmatprep.subr.mxu0 0.0
        %1419 = vmatpush1.msra.mxu0 0.0
        %1420 = vmatprep.subr.mxu0 0.0
        %1421 = vmatpush1.msra.mxu0 0.0
        %1422 = vmatprep.subr.mxu0 0.0
        %1423 = vmatpush1.msra.mxu0 0.0
        %1424 = vmatprep.subr.mxu0 0.0
        %1425 = vmatpush1.msra.mxu0 0.0
        %1426 = vmatprep.subr.mxu0 0.0
        %1427 = vmatpush1.msra.mxu0 0.0
        %1428 = vmatprep.subr.mxu0 0.0
        %v1429 = vand.u32 %v1397, 4294901760
        %1430 = vmatpush1.msra.mxu0 %v1429
        %1431 = vmatprep.subr.mxu0 0.0
        %v1432 = vand.u32 %v1396, 4294901760
        %1433 = vmatpush1.msra.mxu0 %v1432
        %1434 = vmatprep.subr.mxu0 0.0
        %v1435 = vand.u32 %v1395, 4294901760
        %1436 = vmatpush1.msra.mxu0 %v1435
        %1437 = vmatprep.subr.mxu0 0.0
        %1438 = vmatpush2.msra.mxu0 0.0
        %1439 = vmatprep.subr.mxu0 0.0
        %1440 = vmatpush2.msra.mxu0 0.0
        %1441 = vmatprep.subr.mxu0 0.0
        %1442 = vmatpush2.msra.mxu0 0.0
        %1443 = vmatprep.subr.mxu0 0.0
        %1444 = vmatpush2.msra.mxu0 0.0
        %1445 = vmatprep.subr.mxu0 0.0
        %1446 = vmatpush2.msra.mxu0 0.0
        %1447 = vmatprep.subr.mxu0 0.0
        %1448 = vmatpush2.msra.mxu0 0.0
        %1449 = vmatprep.subr.mxu0 0.0
        %1450 = vmatpush2.msra.mxu0 0.0
        %1451 = vmatprep.subr.mxu0 0.0
        %1452 = vmatpush2.msra.mxu0 0.0
        %1453 = vmatprep.subr.mxu0 0.0
        %1454 = vmatpush2.msra.mxu0 0.0
        %1455 = vmatprep.subr.mxu0 0.0
        %1456 = vmatpush2.msra.mxu0 0.0
        %1457 = vmatprep.subr.mxu0 0.0
        %1458 = vmatpush2.msra.mxu0 0.0
        %1459 = vmatprep.subr.mxu0 0.0
        %1460 = vmatpush2.msra.mxu0 0.0
        %1461 = vmatprep.subr.mxu0 0.0
        %1462 = vmatpush2.msra.mxu0 0.0
        %1463 = vmatprep.subr.mxu0 0.0
        %1464 = vmatpush2.msra.mxu0 0.0
        %1465 = vmatprep.subr.mxu0 0.0
        %1466 = vmatpush2.msra.mxu0 0.0
        %1467 = vmatprep.subr.mxu0 0.0
        %1468 = vmatpush2.msra.mxu0 0.0
        %1469 = vmatprep.mubr.f32.mxu0 0.0
        %v1470 = vand.u32 %v1400, 4294901760
        %v1471 = vsub.f32 %v1400, %v1470
        %v1472 = vand.u32 %v1471, 4294901760
        %v1473 = vsub.f32 %v1471, %v1472
        %v1474 = vand.u32 %v1473, 4294901760
        %1475 = vmatmul.mubr.f32.gmra.mxu0 %v1474
        %v1476 = vpop.f32.mrf.mxu0
        %v1477 = vadd.f32 0.0, %v1476
        %v1478 = vpop.f32.mrf.mxu0
        %1479 = vdwg.mxu0
        %1480 = vmatprep.subr.mxu0 0.0
        %1481 = vmatpush1.msra.mxu0 0.0
        %1482 = vmatprep.subr.mxu0 0.0
        %1483 = vmatpush1.msra.mxu0 0.0
        %1484 = vmatprep.subr.mxu0 0.0
        %1485 = vmatpush1.msra.mxu0 0.0
        %1486 = vmatprep.subr.mxu0 0.0
        %1487 = vmatpush1.msra.mxu0 0.0
        %1488 = vmatprep.subr.mxu0 0.0
        %1489 = vmatpush1.msra.mxu0 0.0
        %1490 = vmatprep.subr.mxu0 0.0
        %1491 = vmatpush1.msra.mxu0 0.0
        %1492 = vmatprep.subr.mxu0 0.0
        %1493 = vmatpush1.msra.mxu0 0.0
        %1494 = vmatprep.subr.mxu0 0.0
        %1495 = vmatpush1.msra.mxu0 0.0
        %1496 = vmatprep.subr.mxu0 0.0
        %1497 = vmatpush1.msra.mxu0 0.0
        %1498 = vmatprep.subr.mxu0 0.0
        %1499 = vmatpush1.msra.mxu0 0.0
        %1500 = vmatprep.subr.mxu0 0.0
        %1501 = vmatpush1.msra.mxu0 0.0
        %1502 = vmatprep.subr.mxu0 0.0
        %1503 = vmatpush1.msra.mxu0 0.0
        %1504 = vmatprep.subr.mxu0 0.0
        %1505 = vmatpush1.msra.mxu0 0.0
        %1506 = vmatprep.subr.mxu0 0.0
        %v1507 = vand.u32 %v1397, 4294901760
        %v1508 = vsub.f32 %v1397, %v1507
        %v1509 = vand.u32 %v1508, 4294901760
        %v1510 = vsub.f32 %v1508, %v1509
        %v1511 = vand.u32 %v1510, 4294901760
        %1512 = vmatpush1.msra.mxu0 %v1511
        %1513 = vmatprep.subr.mxu0 0.0
        %v1514 = vand.u32 %v1396, 4294901760
        %v1515 = vsub.f32 %v1396, %v1514
        %v1516 = vand.u32 %v1515, 4294901760
        %v1517 = vsub.f32 %v1515, %v1516
        %v1518 = vand.u32 %v1517, 4294901760
        %1519 = vmatpush1.msra.mxu0 %v1518
        %1520 = vmatprep.subr.mxu0 0.0
        %v1521 = vand.u32 %v1395, 4294901760
        %v1522 = vsub.f32 %v1395, %v1521
        %v1523 = vand.u32 %v1522, 4294901760
        %v1524 = vsub.f32 %v1522, %v1523
        %v1525 = vand.u32 %v1524, 4294901760
        %1526 = vmatpush1.msra.mxu0 %v1525
        %1527 = vmatprep.subr.mxu0 0.0
        %1528 = vmatpush2.msra.mxu0 0.0
        %1529 = vmatprep.subr.mxu0 0.0
        %1530 = vmatpush2.msra.mxu0 0.0
        %1531 = vmatprep.subr.mxu0 0.0
        %1532 = vmatpush2.msra.mxu0 0.0
        %1533 = vmatprep.subr.mxu0 0.0
        %1534 = vmatpush2.msra.mxu0 0.0
        %1535 = vmatprep.subr.mxu0 0.0
        %1536 = vmatpush2.msra.mxu0 0.0
        %1537 = vmatprep.subr.mxu0 0.0
        %1538 = vmatpush2.msra.mxu0 0.0
        %1539 = vmatprep.subr.mxu0 0.0
        %1540 = vmatpush2.msra.mxu0 0.0
        %1541 = vmatprep.subr.mxu0 0.0
        %1542 = vmatpush2.msra.mxu0 0.0
        %1543 = vmatprep.subr.mxu0 0.0
        %1544 = vmatpush2.msra.mxu0 0.0
        %1545 = vmatprep.subr.mxu0 0.0
        %1546 = vmatpush2.msra.mxu0 0.0
        %1547 = vmatprep.subr.mxu0 0.0
        %1548 = vmatpush2.msra.mxu0 0.0
        %1549 = vmatprep.subr.mxu0 0.0
        %1550 = vmatpush2.msra.mxu0 0.0
        %1551 = vmatprep.subr.mxu0 0.0
        %1552 = vmatpush2.msra.mxu0 0.0
        %1553 = vmatprep.subr.mxu0 0.0
        %1554 = vmatpush2.msra.mxu0 0.0
        %1555 = vmatprep.subr.mxu0 0.0
        %1556 = vmatpush2.msra.mxu0 0.0
        %1557 = vmatprep.subr.mxu0 0.0
        %1558 = vmatpush2.msra.mxu0 0.0
        %1559 = vmatprep.mubr.f32.mxu0 0.0
        %v1560 = vand.u32 %v1400, 4294901760
        %1561 = vmatmul.mubr.f32.gmra.mxu0 %v1560
        %v1562 = vpop.f32.mrf.mxu0
        %v1563 = vadd.f32 %v1477, %v1562
        %v1564 = vpop.f32.mrf.mxu0
        %1565 = vdwg.mxu0
        %1566 = vmatprep.subr.mxu0 0.0
        %1567 = vmatpush1.msra.mxu0 0.0
        %1568 = vmatprep.subr.mxu0 0.0
        %1569 = vmatpush1.msra.mxu0 0.0
        %1570 = vmatprep.subr.mxu0 0.0
        %1571 = vmatpush1.msra.mxu0 0.0
        %1572 = vmatprep.subr.mxu0 0.0
        %1573 = vmatpush1.msra.mxu0 0.0
        %1574 = vmatprep.subr.mxu0 0.0
        %1575 = vmatpush1.msra.mxu0 0.0
        %1576 = vmatprep.subr.mxu0 0.0
        %1577 = vmatpush1.msra.mxu0 0.0
        %1578 = vmatprep.subr.mxu0 0.0
        %1579 = vmatpush1.msra.mxu0 0.0
        %1580 = vmatprep.subr.mxu0 0.0
        %1581 = vmatpush1.msra.mxu0 0.0
        %1582 = vmatprep.subr.mxu0 0.0
        %1583 = vmatpush1.msra.mxu0 0.0
        %1584 = vmatprep.subr.mxu0 0.0
        %1585 = vmatpush1.msra.mxu0 0.0
        %1586 = vmatprep.subr.mxu0 0.0
        %1587 = vmatpush1.msra.mxu0 0.0
        %1588 = vmatprep.subr.mxu0 0.0
        %1589 = vmatpush1.msra.mxu0 0.0
        %1590 = vmatprep.subr.mxu0 0.0
        %1591 = vmatpush1.msra.mxu0 0.0
        %1592 = vmatprep.subr.mxu0 0.0
        %v1593 = vand.u32 %v1397, 4294901760
        %v1594 = vsub.f32 %v1397, %v1593
        %1595 = vmatpush1.msra.mxu0 %v1594
        %1596 = vmatprep.subr.mxu0 0.0
        %v1597 = vand.u32 %v1396, 4294901760
        %v1598 = vsub.f32 %v1396, %v1597
        %1599 = vmatpush1.msra.mxu0 %v1598
        %1600 = vmatprep.subr.mxu0 0.0
        %v1601 = vand.u32 %v1395, 4294901760
        %v1602 = vsub.f32 %v1395, %v1601
        %1603 = vmatpush1.msra.mxu0 %v1602
        %1604 = vmatprep.subr.mxu0 0.0
        %1605 = vmatpush2.msra.mxu0 0.0
        %1606 = vmatprep.subr.mxu0 0.0
        %1607 = vmatpush2.msra.mxu0 0.0
        %1608 = vmatprep.subr.mxu0 0.0
        %1609 = vmatpush2.msra.mxu0 0.0
        %1610 = vmatprep.subr.mxu0 0.0
        %1611 = vmatpush2.msra.mxu0 0.0
        %1612 = vmatprep.subr.mxu0 0.0
        %1613 = vmatpush2.msra.mxu0 0.0
        %1614 = vmatprep.subr.mxu0 0.0
        %1615 = vmatpush2.msra.mxu0 0.0
        %1616 = vmatprep.subr.mxu0 0.0
        %1617 = vmatpush2.msra.mxu0 0.0
        %1618 = vmatprep.subr.mxu0 0.0
        %1619 = vmatpush2.msra.mxu0 0.0
        %1620 = vmatprep.subr.mxu0 0.0
        %1621 = vmatpush2.msra.mxu0 0.0
        %1622 = vmatprep.subr.mxu0 0.0
        %1623 = vmatpush2.msra.mxu0 0.0
        %1624 = vmatprep.subr.mxu0 0.0
        %1625 = vmatpush2.msra.mxu0 0.0
        %1626 = vmatprep.subr.mxu0 0.0
        %1627 = vmatpush2.msra.mxu0 0.0
        %1628 = vmatprep.subr.mxu0 0.0
        %1629 = vmatpush2.msra.mxu0 0.0
        %1630 = vmatprep.subr.mxu0 0.0
        %1631 = vmatpush2.msra.mxu0 0.0
        %1632 = vmatprep.subr.mxu0 0.0
        %1633 = vmatpush2.msra.mxu0 0.0
        %1634 = vmatprep.subr.mxu0 0.0
        %1635 = vmatpush2.msra.mxu0 0.0
        %1636 = vmatprep.mubr.f32.mxu0 0.0
        %v1637 = vand.u32 %v1400, 4294901760
        %v1638 = vsub.f32 %v1400, %v1637
        %1639 = vmatmul.mubr.f32.gmra.mxu0 %v1638
        %v1640 = vpop.f32.mrf.mxu0
        %v1641 = vadd.f32 %v1563, %v1640
        %v1642 = vpop.f32.mrf.mxu0
        %1643 = vdwg.mxu0
        %1644 = vmatprep.subr.mxu0 0.0
        %1645 = vmatpush1.msra.mxu0 0.0
        %1646 = vmatprep.subr.mxu0 0.0
        %1647 = vmatpush1.msra.mxu0 0.0
        %1648 = vmatprep.subr.mxu0 0.0
        %1649 = vmatpush1.msra.mxu0 0.0
        %1650 = vmatprep.subr.mxu0 0.0
        %1651 = vmatpush1.msra.mxu0 0.0
        %1652 = vmatprep.subr.mxu0 0.0
        %1653 = vmatpush1.msra.mxu0 0.0
        %1654 = vmatprep.subr.mxu0 0.0
        %1655 = vmatpush1.msra.mxu0 0.0
        %1656 = vmatprep.subr.mxu0 0.0
        %1657 = vmatpush1.msra.mxu0 0.0
        %1658 = vmatprep.subr.mxu0 0.0
        %1659 = vmatpush1.msra.mxu0 0.0
        %1660 = vmatprep.subr.mxu0 0.0
        %1661 = vmatpush1.msra.mxu0 0.0
        %1662 = vmatprep.subr.mxu0 0.0
        %1663 = vmatpush1.msra.mxu0 0.0
        %1664 = vmatprep.subr.mxu0 0.0
        %1665 = vmatpush1.msra.mxu0 0.0
        %1666 = vmatprep.subr.mxu0 0.0
        %1667 = vmatpush1.msra.mxu0 0.0
        %1668 = vmatprep.subr.mxu0 0.0
        %1669 = vmatpush1.msra.mxu0 0.0
        %1670 = vmatprep.subr.mxu0 0.0
        %v1671 = vand.u32 %v1397, 4294901760
        %1672 = vmatpush1.msra.mxu0 %v1671
        %1673 = vmatprep.subr.mxu0 0.0
        %v1674 = vand.u32 %v1396, 4294901760
        %1675 = vmatpush1.msra.mxu0 %v1674
        %1676 = vmatprep.subr.mxu0 0.0
        %v1677 = vand.u32 %v1395, 4294901760
        %1678 = vmatpush1.msra.mxu0 %v1677
        %1679 = vmatprep.subr.mxu0 0.0
        %1680 = vmatpush2.msra.mxu0 0.0
        %1681 = vmatprep.subr.mxu0 0.0
        %1682 = vmatpush2.msra.mxu0 0.0
        %1683 = vmatprep.subr.mxu0 0.0
        %1684 = vmatpush2.msra.mxu0 0.0
        %1685 = vmatprep.subr.mxu0 0.0
        %1686 = vmatpush2.msra.mxu0 0.0
        %1687 = vmatprep.subr.mxu0 0.0
        %1688 = vmatpush2.msra.mxu0 0.0
        %1689 = vmatprep.subr.mxu0 0.0
        %1690 = vmatpush2.msra.mxu0 0.0
        %1691 = vmatprep.subr.mxu0 0.0
        %1692 = vmatpush2.msra.mxu0 0.0
        %1693 = vmatprep.subr.mxu0 0.0
        %1694 = vmatpush2.msra.mxu0 0.0
        %1695 = vmatprep.subr.mxu0 0.0
        %1696 = vmatpush2.msra.mxu0 0.0
        %1697 = vmatprep.subr.mxu0 0.0
        %1698 = vmatpush2.msra.mxu0 0.0
        %1699 = vmatprep.subr.mxu0 0.0
        %1700 = vmatpush2.msra.mxu0 0.0
        %1701 = vmatprep.subr.mxu0 0.0
        %1702 = vmatpush2.msra.mxu0 0.0
        %1703 = vmatprep.subr.mxu0 0.0
        %1704 = vmatpush2.msra.mxu0 0.0
        %1705 = vmatprep.subr.mxu0 0.0
        %1706 = vmatpush2.msra.mxu0 0.0
        %1707 = vmatprep.subr.mxu0 0.0
        %1708 = vmatpush2.msra.mxu0 0.0
        %1709 = vmatprep.subr.mxu0 0.0
        %1710 = vmatpush2.msra.mxu0 0.0
        %1711 = vmatprep.mubr.f32.mxu0 0.0
        %v1712 = vand.u32 %v1400, 4294901760
        %v1713 = vsub.f32 %v1400, %v1712
        %v1714 = vand.u32 %v1713, 4294901760
        %1715 = vmatmul.mubr.f32.gmra.mxu0 %v1714
        %v1716 = vpop.f32.mrf.mxu0
        %v1717 = vadd.f32 %v1641, %v1716
        %v1718 = vpop.f32.mrf.mxu0
        %1719 = vdwg.mxu0
        %1720 = vmatprep.subr.mxu0 0.0
        %1721 = vmatpush1.msra.mxu0 0.0
        %1722 = vmatprep.subr.mxu0 0.0
        %1723 = vmatpush1.msra.mxu0 0.0
        %1724 = vmatprep.subr.mxu0 0.0
        %1725 = vmatpush1.msra.mxu0 0.0
        %1726 = vmatprep.subr.mxu0 0.0
        %1727 = vmatpush1.msra.mxu0 0.0
        %1728 = vmatprep.subr.mxu0 0.0
        %1729 = vmatpush1.msra.mxu0 0.0
        %1730 = vmatprep.subr.mxu0 0.0
        %1731 = vmatpush1.msra.mxu0 0.0
        %1732 = vmatprep.subr.mxu0 0.0
        %1733 = vmatpush1.msra.mxu0 0.0
        %1734 = vmatprep.subr.mxu0 0.0
        %1735 = vmatpush1.msra.mxu0 0.0
        %1736 = vmatprep.subr.mxu0 0.0
        %1737 = vmatpush1.msra.mxu0 0.0
        %1738 = vmatprep.subr.mxu0 0.0
        %1739 = vmatpush1.msra.mxu0 0.0
        %1740 = vmatprep.subr.mxu0 0.0
        %1741 = vmatpush1.msra.mxu0 0.0
        %1742 = vmatprep.subr.mxu0 0.0
        %1743 = vmatpush1.msra.mxu0 0.0
        %1744 = vmatprep.subr.mxu0 0.0
        %1745 = vmatpush1.msra.mxu0 0.0
        %1746 = vmatprep.subr.mxu0 0.0
        %v1747 = vand.u32 %v1397, 4294901760
        %v1748 = vsub.f32 %v1397, %v1747
        %v1749 = vand.u32 %v1748, 4294901760
        %1750 = vmatpush1.msra.mxu0 %v1749
        %1751 = vmatprep.subr.mxu0 0.0
        %v1752 = vand.u32 %v1396, 4294901760
        %v1753 = vsub.f32 %v1396, %v1752
        %v1754 = vand.u32 %v1753, 4294901760
        %1755 = vmatpush1.msra.mxu0 %v1754
        %1756 = vmatprep.subr.mxu0 0.0
        %v1757 = vand.u32 %v1395, 4294901760
        %v1758 = vsub.f32 %v1395, %v1757
        %v1759 = vand.u32 %v1758, 4294901760
        %1760 = vmatpush1.msra.mxu0 %v1759
        %1761 = vmatprep.subr.mxu0 0.0
        %1762 = vmatpush2.msra.mxu0 0.0
        %1763 = vmatprep.subr.mxu0 0.0
        %1764 = vmatpush2.msra.mxu0 0.0
        %1765 = vmatprep.subr.mxu0 0.0
        %1766 = vmatpush2.msra.mxu0 0.0
        %1767 = vmatprep.subr.mxu0 0.0
        %1768 = vmatpush2.msra.mxu0 0.0
        %1769 = vmatprep.subr.mxu0 0.0
        %1770 = vmatpush2.msra.mxu0 0.0
        %1771 = vmatprep.subr.mxu0 0.0
        %1772 = vmatpush2.msra.mxu0 0.0
        %1773 = vmatprep.subr.mxu0 0.0
        %1774 = vmatpush2.msra.mxu0 0.0
        %1775 = vmatprep.subr.mxu0 0.0
        %1776 = vmatpush2.msra.mxu0 0.0
        %1777 = vmatprep.subr.mxu0 0.0
        %1778 = vmatpush2.msra.mxu0 0.0
        %1779 = vmatprep.subr.mxu0 0.0
        %1780 = vmatpush2.msra.mxu0 0.0
        %1781 = vmatprep.subr.mxu0 0.0
        %1782 = vmatpush2.msra.mxu0 0.0
        %1783 = vmatprep.subr.mxu0 0.0
        %1784 = vmatpush2.msra.mxu0 0.0
        %1785 = vmatprep.subr.mxu0 0.0
        %1786 = vmatpush2.msra.mxu0 0.0
        %1787 = vmatprep.subr.mxu0 0.0
        %1788 = vmatpush2.msra.mxu0 0.0
        %1789 = vmatprep.subr.mxu0 0.0
        %1790 = vmatpush2.msra.mxu0 0.0
        %1791 = vmatprep.subr.mxu0 0.0
        %1792 = vmatpush2.msra.mxu0 0.0
        %1793 = vmatprep.mubr.f32.mxu0 0.0
        %v1794 = vand.u32 %v1400, 4294901760
        %1795 = vmatmul.mubr.f32.gmra.mxu0 %v1794
        %v1796 = vpop.f32.mrf.mxu0
        %v1797 = vadd.f32 %v1717, %v1796
        %v1798 = vpop.f32.mrf.mxu0
        %1799 = vdwg.mxu0
        %1800 = vmatprep.subr.mxu0 0.0
        %1801 = vmatpush1.msra.mxu0 0.0
        %1802 = vmatprep.subr.mxu0 0.0
        %1803 = vmatpush1.msra.mxu0 0.0
        %1804 = vmatprep.subr.mxu0 0.0
        %1805 = vmatpush1.msra.mxu0 0.0
        %1806 = vmatprep.subr.mxu0 0.0
        %1807 = vmatpush1.msra.mxu0 0.0
        %1808 = vmatprep.subr.mxu0 0.0
        %1809 = vmatpush1.msra.mxu0 0.0
        %1810 = vmatprep.subr.mxu0 0.0
        %1811 = vmatpush1.msra.mxu0 0.0
        %1812 = vmatprep.subr.mxu0 0.0
        %1813 = vmatpush1.msra.mxu0 0.0
        %1814 = vmatprep.subr.mxu0 0.0
        %1815 = vmatpush1.msra.mxu0 0.0
        %1816 = vmatprep.subr.mxu0 0.0
        %1817 = vmatpush1.msra.mxu0 0.0
        %1818 = vmatprep.subr.mxu0 0.0
        %1819 = vmatpush1.msra.mxu0 0.0
        %1820 = vmatprep.subr.mxu0 0.0
        %1821 = vmatpush1.msra.mxu0 0.0
        %1822 = vmatprep.subr.mxu0 0.0
        %1823 = vmatpush1.msra.mxu0 0.0
        %1824 = vmatprep.subr.mxu0 0.0
        %1825 = vmatpush1.msra.mxu0 0.0
        %1826 = vmatprep.subr.mxu0 0.0
        %v1827 = vand.u32 %v1397, 4294901760
        %1828 = vmatpush1.msra.mxu0 %v1827
        %1829 = vmatprep.subr.mxu0 0.0
        %v1830 = vand.u32 %v1396, 4294901760
        %1831 = vmatpush1.msra.mxu0 %v1830
        %1832 = vmatprep.subr.mxu0 0.0
        %v1833 = vand.u32 %v1395, 4294901760
        %1834 = vmatpush1.msra.mxu0 %v1833
        %1835 = vmatprep.subr.mxu0 0.0
        %1836 = vmatpush2.msra.mxu0 0.0
        %1837 = vmatprep.subr.mxu0 0.0
        %1838 = vmatpush2.msra.mxu0 0.0
        %1839 = vmatprep.subr.mxu0 0.0
        %1840 = vmatpush2.msra.mxu0 0.0
        %1841 = vmatprep.subr.mxu0 0.0
        %1842 = vmatpush2.msra.mxu0 0.0
        %1843 = vmatprep.subr.mxu0 0.0
        %1844 = vmatpush2.msra.mxu0 0.0
        %1845 = vmatprep.subr.mxu0 0.0
        %1846 = vmatpush2.msra.mxu0 0.0
        %1847 = vmatprep.subr.mxu0 0.0
        %1848 = vmatpush2.msra.mxu0 0.0
        %1849 = vmatprep.subr.mxu0 0.0
        %1850 = vmatpush2.msra.mxu0 0.0
        %1851 = vmatprep.subr.mxu0 0.0
        %1852 = vmatpush2.msra.mxu0 0.0
        %1853 = vmatprep.subr.mxu0 0.0
        %1854 = vmatpush2.msra.mxu0 0.0
        %1855 = vmatprep.subr.mxu0 0.0
        %1856 = vmatpush2.msra.mxu0 0.0
        %1857 = vmatprep.subr.mxu0 0.0
        %1858 = vmatpush2.msra.mxu0 0.0
        %1859 = vmatprep.subr.mxu0 0.0
        %1860 = vmatpush2.msra.mxu0 0.0
        %1861 = vmatprep.subr.mxu0 0.0
        %1862 = vmatpush2.msra.mxu0 0.0
        %1863 = vmatprep.subr.mxu0 0.0
        %1864 = vmatpush2.msra.mxu0 0.0
        %1865 = vmatprep.subr.mxu0 0.0
        %1866 = vmatpush2.msra.mxu0 0.0
        %1867 = vmatprep.mubr.f32.mxu0 0.0
        %v1868 = vand.u32 %v1400, 4294901760
        %1869 = vmatmul.mubr.f32.gmra.mxu0 %v1868
        %v1870 = vpop.f32.mrf.mxu0
        %v1871 = vadd.f32 %v1797, %v1870
        %v1872 = vpop.f32.mrf.mxu0
        %1873 = vdwg.mxu0
        %v1874 = vadd.f32 %v1871, 1e-16
        %1876 = vrot.lane.b32.xlu0 %v1874, 32
        %v1877 = vpop.permute.xlu0 %1876
        %v1879 = vrcp.pop %v1877
        %v1880 = vmul.f32 %v1871, %v1879
        %1882 = vrot.lane.b32.xlu0 %v775, 96
        %v1883 = vpop.permute.xlu0 %1882
        %v1885 = vadd.f32 %v1880, %v1883
        %v1886 = vld [vmem:[%s2] sm:$0x1]
        %v1888 = vlaneseq
        %v1889 = vshrl.u32 %v1888, 7
        %v1890 = vsub.s32 0, %v1889
        %v1891 = vrot.slane %v1886, %v1890
        %1892 = vrot.lane.b32.xlu0 %v1891, 32
        %v1893 = vpop.permute.xlu0 %1892
        %v1895 = vadd.f32 %v1885, %v1893
        %vm1896 = vcmp.gt.f32.partialorder %v1895, 0.0
        %v1897 = vmin.f32 %v1895, 0.0
        %v1898 = vmul.f32 %v1897, 1.442695
        %v1899 = vpow.pop %v1898
        %v1900 = vsub.f32 %v1899, 1.0
        %v1901 = vsel %vm1896, %v1895, %v1900
        %1903 = vrot.lane.b32.xlu0 %v1901, 96
        %v1904 = vpop.permute.xlu0 %1903
        %1906 = vst.msk [vmem:[%s242] sm:$0xff] %vm249, %v1904
        %s1907 = sand.u32 %s140, 1
        %s1908 = scalar_lea.sflag [#allocation5], %s1907
        %s1909 = sand.u32 %s140, 1
        %s1910 = smul.addr %s1909, 8
        %s1911 = scalar_lea.vmem [#allocation6], %s1910
        // Predicated region
        $region45: #{tpu_custom_call.1} parent=39 // pred_check
          %p1912 = pneg %p150
        $region46: #{tpu_custom_call.1} parent=39 // pred_check_branch
          %1914 = sbr.rel (%p1912) target = $region48
        $region47: #{tpu_custom_call.1} parent=39 // pred_region
          %s1916 = ssub.s32 128, 128
          %1917 = vsyncadd %s1908, %s1916
          %s1918 = smul.addr %s22, 128
          %s1919 = scalar_lea.hbm %s5, %s1918
          %s1921 = sshll.u32 %s1911, 4
          %s1922 = int_to_ptr.vmem [resolvable:$true] %s1921
          %1924 = dma.vmem_to_hbm [thread:$0]  %s1922, 128, %s1919, %s1908
        $region48: #{tpu_custom_call.1} parent=39 // pred_fallthru
          _
      $region40: #{tpu_custom_call.1} parent=5 // pred_fallthru
        _
      %p1925 = scmp.le.s32.totalorder 2, %s17
      // Predicated region
      $region49: #{tpu_custom_call.1} parent=5 // pred_check
        %p1926 = pneg %p1925
      $region50: #{tpu_custom_call.1} parent=5 // pred_check_branch
        %1928 = sbr.rel (%p1926) target = $region52
      $region51: #{tpu_custom_call.1} parent=5 // pred_region
        %s1929 = ssub.s32 %s17, 2
        // Predicated region
        $region53: #{tpu_custom_call.1} parent=51 // pred_check
          %p1930 = pneg %p156
        $region54: #{tpu_custom_call.1} parent=51 // pred_check_branch
          %1932 = sbr.rel (%p1930) target = $region56
        $region55: #{tpu_custom_call.1} parent=51 // pred_region
          %s1933 = sand.u32 %s141, 1
          %s1934 = scalar_lea.sflag [#allocation5], %s1933
          %s1935 = sand.u32 %s141, 1
          %s1936 = smul.addr %s1935, 8
          %s1937 = scalar_lea.vmem [#allocation6], %s1936
          %1938 = dma.done %s1934, 128
        $region56: #{tpu_custom_call.1} parent=51 // pred_fallthru
          _
      $region52: #{tpu_custom_call.1} parent=5 // pred_fallthru
        _
    $region6: #{tpu_custom_call.1} parent=1 // loop_footer
      %s21 = sadd.s32 1, %s17
    $region7: #{tpu_custom_call.1} parent=1 // loop_footer_branch
      %16 = sbr.rel target = $region3
    $region8: #{tpu_custom_call.1} parent=1 // loop_exit
      _
    %1939 = vsyncpa [#allocation4], 1
    %s1940 = scalar_lea.sflag [#allocation4], 1
    %1941 = vsyncpa %s1940, 1
    %1942 = vsyncpa [#allocation5], 1
    %s1943 = scalar_lea.sflag [#allocation5], 1
    %1944 = vsyncpa %s1943, 1

</llo_original>
